<compile_context>
chip_gen: v7x
topology: tpu7x:2x2x1
jax: 0.10.0
libtpu: 0.0.40
codegen_flags: <defaults>
</compile_context>

<pallas_src>
import jax
import jax.numpy as jnp
from jax.experimental import pallas as pl
from jax.experimental.pallas import tpu as pltpu

NEG_BIG = -1e30   # stands in for -inf in masked_fill before softmax
LN_EPS = 1e-5
BN_EPS = 1e-5


def _silu(x):
    return x * jax.nn.sigmoid(x)


def _round_up(x, m):
    return ((x + m - 1) // m) * m


# --------------------------------------------------------------------------
# Kernel 1: [conv_w | conv_c] -> BN(eval, folded) -> SiLU -> LayerNorm ->
# projection through the H-columns of the first swish layer (LN affine and
# conv bias folded).  Output: base (B, F, Tpad) f32, channel-major.
# --------------------------------------------------------------------------
def fused_conv_base(vp, pw, pc, sw, sc):
    B, Tpad, Cin = vp.shape
    K, _, Hc = pw["w"].shape
    dw = sw["w1"].shape[1]
    dc = sc["w1"].shape[1]
    F = dw + dc
    pad = (K - 1) // 2   # TODO(synk): matches PyTorch 'same' length only for odd K
    Tp = Tpad + 2 * pad
    vpad = jnp.pad(vp, ((0, 0), (pad, pad), (0, 0))).astype(jnp.bfloat16)

    def fold(p, swp):
        scale = p["bn_scale"]                          # (1, Hc) eval-BN scale
        shift = p["bn_shift"] + p["b"] * scale         # conv bias folded into BN shift
        w1h = p["ln_g"][0][:, None] * swp["w1"][2:]    # LN gamma folded, (Hc, d)
        b1 = swp["b1"] + p["ln_b"] @ swp["w1"][2:]     # LN beta folded,  (1, d)
        return scale, shift, w1h.astype(jnp.bfloat16), b1

    bnsW, bnbW, pWm, b1w = fold(pw, sw)
    bnsC, bnbC, pCm, b1c = fold(pc, sc)
    b1 = jnp.concatenate([b1w, b1c], axis=1)           # (1, F)
    wW = pw["w"].astype(jnp.bfloat16)
    wC = pc["w"].astype(jnp.bfloat16)

    def kernel(vpad_ref, wW_ref, wC_ref, bnsW_ref, bnbW_ref, bnsC_ref,
               bnbC_ref, pW_ref, pC_ref, b1_ref, out_ref):
        vb = vpad_ref[0]                                # (Tp, Cin) bf16

        def branch(w_ref, bns, bnb, p_ref):
            # conv as K accumulated shifted matmuls (no im2col concat)
            acc = jnp.dot(vb[0:Tpad, :], w_ref[0],
                          preferred_element_type=jnp.float32)
            for k in range(1, K):
                acc = acc + jnp.dot(vb[k:k + Tpad, :], w_ref[k],
                                    preferred_element_type=jnp.float32)
            x = _silu(acc * bns + bnb)                  # eval BN folded; dropout=id
            m = jnp.mean(x, axis=-1, keepdims=True)
            var = jnp.mean((x - m) ** 2, axis=-1, keepdims=True)
            xn = ((x - m) * jax.lax.rsqrt(var + LN_EPS)).astype(jnp.bfloat16)
            return jnp.dot(xn, p_ref[...], preferred_element_type=jnp.float32)

        bw = branch(wW_ref, bnsW_ref[...], bnbW_ref[...], pW_ref)   # (Tpad, dw)
        bc = branch(wC_ref, bnsC_ref[...], bnbC_ref[...], pC_ref)   # (Tpad, dc)
        base_t = jnp.concatenate([bw, bc], axis=-1) + b1_ref[...]   # (Tpad, F)
        out_ref[0] = base_t.T                                       # (F, Tpad)

    in_specs = [
        pl.BlockSpec((1, Tp, Cin), lambda b: (b, 0, 0)),
        pl.BlockSpec((K, Cin, Hc), lambda b: (0, 0, 0)),
        pl.BlockSpec((K, Cin, Hc), lambda b: (0, 0, 0)),
        pl.BlockSpec((1, Hc), lambda b: (0, 0)),
        pl.BlockSpec((1, Hc), lambda b: (0, 0)),
        pl.BlockSpec((1, Hc), lambda b: (0, 0)),
        pl.BlockSpec((1, Hc), lambda b: (0, 0)),
        pl.BlockSpec((Hc, dw), lambda b: (0, 0)),
        pl.BlockSpec((Hc, dc), lambda b: (0, 0)),
        pl.BlockSpec((1, F), lambda b: (0, 0)),
    ]
    return pl.pallas_call(
        kernel,
        out_shape=jax.ShapeDtypeStruct((B, F, Tpad), jnp.float32),
        grid=(B,),
        in_specs=in_specs,
        out_specs=pl.BlockSpec((1, F, Tpad), lambda b: (b, 0, 0)),
        compiler_params=pltpu.CompilerParams(
            dimension_semantics=("parallel",),
            vmem_limit_bytes=32 * 1024 * 1024),
    )(vpad, wW, wC, bnsW, bnbW, bnsC, bnbC, pWm, pCm, b1)


# --------------------------------------------------------------------------
# Main learned-upsampling wrapper + kernel (grid = (batch, mel tiles))
# --------------------------------------------------------------------------
def learned_upsampling(params, duration, V, src_len, src_mask, max_seq_len,
                       max_mel_len_static=None):
    del src_len                        # unused by the reference forward as well
    B, T = duration.shape
    D = V.shape[-1]
    dw = params["swish_w"]["w1"].shape[1]
    dc = params["swish_c"]["w1"].shape[1]
    F = dw + dc

    # ---- lane-dense source axis: pad T up to a multiple of 128 --------------
    Tpad = max(128, _round_up(T, 128))
    tp = Tpad - T
    dur_p = jnp.pad(duration, ((0, 0), (0, tp)))
    V_p = jnp.pad(V, ((0, 0), (0, tp), (0, 0)))
    srcm_p = jnp.pad(src_mask, ((0, 0), (0, tp)), constant_values=True)

    mel_len = jnp.minimum(jnp.round(jnp.sum(duration, axis=-1)).astype(jnp.int32),
                          max_seq_len)
    if max_mel_len_static is None:
        # TODO(synk): in serving pass max_mel_len_static (or a small bucket set)
        # to avoid this host round-trip before the kernel can launch.
        M = int(jax.device_get(jnp.max(mel_len)))
    else:
        M = int(max_mel_len_static)
    M = max(M, 1)

    # ---- device-aware tile size / explicit VMEM budget ----------------------
    kind = jax.devices()[0].device_kind.lower()
    vmem_cap = (96 * 1024 * 1024 if ("v5" in kind or "v6" in kind)
                else 48 * 1024 * 1024)       # leave headroom on 64 MiB parts (v7x)
    # live-set accounting (bytes) as a function of TILE_M:
    #   per mel row : F pre-activation planes + ~10 temps (S/E/mask/logits/p/W),
    #                 all f32 over Tpad lanes, plus the double-buffered outputs.
    #   fixed       : double-buffered mel-invariant input blocks + slack.
    per_row = (F + 10) * Tpad * 4 + 2 * (D * 4 + Tpad * 4)
    fixed = 2 * (3 * Tpad * 4 + Tpad * D * 2 + F * Tpad * 4 + dc * D * 2
                 + 2 * D * 4) + 2 * 1024 * 1024
    tile_budget = max(8, ((vmem_cap - fixed) // per_row) // 8 * 8)
    TILE_M = int(min(tile_budget, 256, _round_up(M, 8)))
    # keep both TensorCores busy on single-batch calls (v7x megacore)
    if B == 1 and _round_up(M, TILE_M) // TILE_M < 2 and M > 8:
        TILE_M = _round_up((M + 1) // 2, 8)
    Mp = _round_up(M, TILE_M)
    n_m = Mp // TILE_M
    vmem_limit = int(min(vmem_cap, max(32 * 1024 * 1024,
                                       fixed + TILE_M * per_row)))

    mel_mask_p = jnp.arange(Mp)[None, :] >= mel_len[:, None]    # (B, Mp) True=pad

    e_k = jnp.cumsum(dur_p, axis=1)
    s_k = e_k - dur_p
    s3 = s_k[:, None, :].astype(jnp.float32)                    # (B, 1, Tpad)
    e3 = e_k[:, None, :].astype(jnp.float32)
    srcm3 = srcm_p.astype(jnp.float32)[:, None, :]              # (B, 1, Tpad)
    melm3 = mel_mask_p.astype(jnp.float32)[:, :, None]          # (B, Mp, 1)

    # m-invariant conv + first-swish projection, once per batch element
    base = fused_conv_base(V_p, params["conv_w"], params["conv_c"],
                           params["swish_w"], params["swish_c"])  # (B,F,Tpad) f32
    v_b = V_p.astype(jnp.bfloat16)

    # small per-feature parameters -> SMEM scalar tables
    sw, sc = params["swish_w"], params["swish_c"]
    w1se = jnp.concatenate([sw["w1"][:2].T, sc["w1"][:2].T], axis=0)  # (F,2)=[a_s,a_e]
    w2w = sw["w2"]                                        # (dw, dw)
    w2c = sc["w2"]                                        # (dc, dc)
    b2 = jnp.concatenate([sw["b2"], sc["b2"]], axis=1)    # (1, F)
    wl = params["linear_w"]["w"]                          # (1, dw)
    blw = params["linear_w"]["b"]                         # (1, 1)
    wep = params["linear_einsum"]["w"].astype(jnp.bfloat16)   # (dc, D)
    lng, lnb = params["layer_norm"]["g"], params["layer_norm"]["b"]   # (1, D)

    def kernel(w1se_ref, w2w_ref, w2c_ref, b2_ref, wl_ref, blw_ref,      # SMEM
               s_ref, e_ref, srcm_ref, melm_ref, base_ref, v_ref,
               wep_ref, lng_ref, lnb_ref, up_ref, wout_ref):
        m_idx = pl.program_id(1)
        s_kk = s_ref[0]                 # (1, Tpad)
        e_kk = e_ref[0]                 # (1, Tpad)
        src_m = srcm_ref[0]             # (1, Tpad)     1.0 = padded src position
        mel_m = melm_ref[0]             # (TILE_M, 1)   1.0 = padded mel position
        base2 = base_ref[0]             # (F, Tpad) f32

        t_pos = (jax.lax.broadcasted_iota(jnp.int32, (TILE_M, 1), 0)
                 + m_idx * TILE_M + 1).astype(jnp.float32)
        invalid = jnp.maximum(src_m, mel_m) > 0.5                  # (TILE_M, Tpad)
        S = jnp.where(invalid, 0.0, t_pos - s_kk)
        E = jnp.where(invalid, 0.0, e_kk - t_pos)

        def swish_branch(lo, hi, w2_ref):
            # Streamed, weight-stationary SwishBlock for features [lo, hi):
            # each hidden feature's (TILE_M, Tpad) plane is built lane-dense,
            # SiLU'd, and scatter-accumulated into the branch pre-activations
            # with SMEM scalar weights (no per-m MXU reload, no FxF broadcast).
            d = hi - lo
            acc = [None] * d
            for fi in range(d):
                f = lo + fi
                pre1 = (w1se_ref[f, 0] * S + w1se_ref[f, 1] * E
                        + base2[f:f + 1, :])
                pf = _silu(pre1)
                for gi in range(d):
                    term = w2_ref[fi, gi] * pf
                    acc[gi] = term if acc[gi] is None else acc[gi] + term
            return [_silu(acc[gi] + b2_ref[0, lo + gi]) for gi in range(d)]

        h2w = swish_branch(0, dw, w2w_ref)      # w-branch only feeds logits
        h2c = swish_branch(dw, F, w2c_ref)      # c-branch only feeds the einsum

        # attention logits -> masked softmax over (padded) source positions
        logits = wl_ref[0, 0] * h2w[0]
        for g in range(1, dw):
            logits = logits + wl_ref[0, g] * h2w[g]
        logits = logits + blw_ref[0, 0]
        logits = jnp.where(src_m > 0.5, NEG_BIG, logits)            # (TILE_M, Tpad)
        lmax = jnp.max(logits, axis=-1, keepdims=True)
        pnum = jnp.exp(logits - lmax)
        W = pnum * pl.reciprocal(jnp.sum(pnum, axis=-1, keepdims=True), approx=True)
        W = jnp.where(mel_m > 0.5, 0.0, W)

        # W @ V + Linear(einsum(W, C)), LayerNorm, mel-mask
        wv = jnp.dot(W.astype(jnp.bfloat16), v_ref[0],
                     preferred_element_type=jnp.float32)            # (TILE_M, D)
        wc = jnp.concatenate(
            [jnp.sum(h2c[g] * W, axis=-1, keepdims=True) for g in range(dc)],
            axis=-1)                                                # (TILE_M, dc)
        proj = jnp.dot(wc.astype(jnp.bfloat16), wep_ref[...],
                       preferred_element_type=jnp.float32)          # (TILE_M, D)
        up = wv + proj
        mean = jnp.mean(up, axis=-1, keepdims=True)
        var = jnp.mean((up - mean) ** 2, axis=-1, keepdims=True)
        up = ((up - mean) * jax.lax.rsqrt(var + LN_EPS)
              * lng_ref[...] + lnb_ref[...])
        up = jnp.where(mel_m > 0.5, 0.0, up)

        up_ref[0] = up.astype(up_ref.dtype)
        wout_ref[0] = W.astype(wout_ref.dtype)

    smem = pl.BlockSpec(memory_space=pltpu.MemorySpace.SMEM)
    in_specs = [
        smem, smem, smem, smem, smem, smem,                      # scalar tables
        pl.BlockSpec((1, 1, Tpad), lambda b, m: (b, 0, 0)),      # s_k
        pl.BlockSpec((1, 1, Tpad), lambda b, m: (b, 0, 0)),      # e_k
        pl.BlockSpec((1, 1, Tpad), lambda b, m: (b, 0, 0)),      # src mask
        pl.BlockSpec((1, TILE_M, 1), lambda b, m: (b, m, 0)),    # mel mask
        pl.BlockSpec((1, F, Tpad), lambda b, m: (b, 0, 0)),      # swish base
        pl.BlockSpec((1, Tpad, D), lambda b, m: (b, 0, 0)),      # V (bf16)
        pl.BlockSpec((dc, D), lambda b, m: (0, 0)),              # linear_einsum w
        pl.BlockSpec((1, D), lambda b, m: (0, 0)),               # ln gamma
        pl.BlockSpec((1, D), lambda b, m: (0, 0)),               # ln beta
    ]
    out_specs = (pl.BlockSpec((1, TILE_M, D), lambda b, m: (b, m, 0)),
                 pl.BlockSpec((1, TILE_M, Tpad), lambda b, m: (b, m, 0)))

    up_full, W_full = pl.pallas_call(
        kernel,
        out_shape=(jax.ShapeDtypeStruct((B, Mp, D), jnp.float32),
                   jax.ShapeDtypeStruct((B, Mp, Tpad), jnp.float32)),
        grid=(B, n_m),
        in_specs=in_specs,
        out_specs=out_specs,
        compiler_params=pltpu.CompilerParams(
            dimension_semantics=("parallel", "parallel"),
            vmem_limit_bytes=vmem_limit),
    )(w1se, w2w, w2c, b2, wl, blw, s3, e3, srcm3, melm3, base, v_b,
      wep, lng, lnb)

    return up_full[:, :M], mel_mask_p[:, :M], mel_len, W_full[:, :M, :T]


# --------------------------------------------------------------------------
# Deterministic parameter init (shapes from LearnedUpsampling.__init__)
# --------------------------------------------------------------------------
def init_params(key, d_pred, conv_out, ksize, dim_w, dim_c):
    ks = jax.random.split(key, 10)

    def rnd(k, shape, scale=0.1):
        return jax.random.normal(k, shape, jnp.float32) * scale

    def conv_p(k):
        return dict(
            w=rnd(k, (ksize, d_pred, conv_out)),
            b=jnp.zeros((1, conv_out), jnp.float32),
            # eval-mode BatchNorm1d folded (gamma=1, beta=0, mean=0, var=1)
            bn_scale=jnp.full((1, conv_out), 1.0 / jnp.sqrt(1.0 + BN_EPS), jnp.float32),
            bn_shift=jnp.zeros((1, conv_out), jnp.float32),
            ln_g=jnp.ones((1, conv_out), jnp.float32),
            ln_b=jnp.zeros((1, conv_out), jnp.float32),
        )

    return dict(
        conv_w=conv_p(ks[0]),
        conv_c=conv_p(ks[1]),
        swish_w=dict(w1=rnd(ks[2], (conv_out + 2, dim_w)),
                     b1=rnd(ks[3], (1, dim_w)),
                     w2=rnd(ks[4], (dim_w, dim_w)),
                     b2=jnp.zeros((1, dim_w), jnp.float32)),
        linear_w=dict(w=rnd(ks[5], (1, dim_w)),          # stored row-form (out=1)
                      b=jnp.zeros((1, 1), jnp.float32)),
        swish_c=dict(w1=rnd(ks[6], (conv_out + 2, dim_c)),
                     b1=rnd(ks[7], (1, dim_c)),
                     w2=rnd(ks[8], (dim_c, dim_c)),
                     b2=jnp.zeros((1, dim_c), jnp.float32)),
        linear_einsum=dict(w=rnd(ks[9], (dim_c, d_pred))),  # LinearNorm: no bias
        layer_norm=dict(g=jnp.ones((1, d_pred), jnp.float32),
                        b=jnp.zeros((1, d_pred), jnp.float32)),
    )


# --------------------------------------------------------------------------
# Pure-JAX reference (same math, no Pallas) for a sanity check
# --------------------------------------------------------------------------
def _ref_conv_block(v, p):
    K = p["w"].shape[0]
    pad = (K - 1) // 2
    T = v.shape[1]
    vpad = jnp.pad(v, ((0, 0), (pad, pad), (0, 0)))
    acc = sum(jnp.einsum('bti,io->bto', vpad[:, k:k + T], p["w"][k]) for k in range(K))
    x = acc + p["b"][None]
    x = x * p["bn_scale"][None] + p["bn_shift"][None]
    x = _silu(x)
    mean = x.mean(-1, keepdims=True)
    var = ((x - mean) ** 2).mean(-1, keepdims=True)
    return (x - mean) * jax.lax.rsqrt(var + LN_EPS) * p["ln_g"][None] + p["ln_b"][None]


def _ref_forward(params, duration, V, src_mask, max_seq_len):
    B, T = duration.shape
    mel_len = jnp.minimum(jnp.round(duration.sum(-1)).astype(jnp.int32), max_seq_len)
    M = int(jax.device_get(jnp.max(mel_len)))
    mel_mask = jnp.arange(M)[None, :] >= mel_len[:, None]
    src_m = src_mask[:, None, :]
    mel_m = mel_mask[:, :, None]
    attn = jnp.logical_or(src_m, mel_m)
    e_k = jnp.cumsum(duration, 1)[:, None, :]
    s_k = e_k - duration[:, None, :]
    t = (jnp.arange(M, dtype=jnp.float32) + 1.0)[None, :, None]
    S = jnp.where(attn, 0.0, t - s_k)
    E = jnp.where(attn, 0.0, e_k - t)

    def swish(H, w1, b1, w2, b2):
        x = jnp.concatenate(
            [S[..., None], E[..., None],
             jnp.broadcast_to(H[:, None], (B, M, T, H.shape[-1]))], axis=-1)
        return _silu(_silu(x @ w1 + b1) @ w2 + b2)

    Hw = _ref_conv_block(V, params["conv_w"])
    Hc = _ref_conv_block(V, params["conv_c"])
    sw, lw = params["swish_w"], params["linear_w"]
    sc, le, ln = params["swish_c"], params["linear_einsum"], params["layer_norm"]

    Wf = swish(Hw, sw["w1"], sw["b1"], sw["w2"], sw["b2"])
    logits = jnp.sum(Wf * lw["w"], axis=-1) + lw["b"][0, 0]
    logits = jnp.where(src_m, NEG_BIG, logits)
    Wm = jax.nn.softmax(logits, axis=2)
    Wm = jnp.where(mel_m, 0.0, Wm)

    C = swish(Hc, sc["w1"], sc["b1"], sc["w2"], sc["b2"])
    up = (jnp.einsum('bmt,btd->bmd', Wm, V)
          + jnp.einsum('bmt,bmtp->bmp', Wm, C) @ le["w"])
    mean = up.mean(-1, keepdims=True)
    var = ((up - mean) ** 2).mean(-1, keepdims=True)
    up = (up - mean) * jax.lax.rsqrt(var + LN_EPS) * ln["g"][None] + ln["b"][None]
    up = jnp.where(mel_m, 0.0, up)
    return up, mel_mask, mel_len, Wm


if __name__ == "__main__":
    B, T = 2, 8
    d_pred, conv_out, ksize, dim_w, dim_c = 32, 8, 3, 8, 8
    max_seq_len = 64

    key = jax.random.PRNGKey(0)
    kp, kd, kv = jax.random.split(key, 3)
    params = init_params(kp, d_pred, conv_out, ksize, dim_w, dim_c)

    src_len = jnp.array([8, 6], dtype=jnp.int32)
    src_mask = jnp.arange(T)[None, :] >= src_len[:, None]       # True = padded
    duration = jax.random.uniform(kd, (B, T), jnp.float32, 0.5, 2.5)
    duration = jnp.where(src_mask, 0.0, duration)
    V = jax.random.normal(kv, (B, T, d_pred), jnp.float32)

    up, mel_mask, mel_len, W = learned_upsampling(
        params, duration, V, src_len, src_mask, max_seq_len)
    jax.block_until_ready((up, W, mel_mask, mel_len))

    up_ref, mel_mask_ref, mel_len_ref, W_ref = _ref_forward(
        params, duration, V, src_mask, max_seq_len)
    assert up.shape == up_ref.shape and W.shape == W_ref.shape
    assert bool(jnp.all(mel_mask == mel_mask_ref))
    assert bool(jnp.all(mel_len == mel_len_ref))
    # bf16 MXU operands + approx softmax reciprocal -> slightly looser tolerance
    assert bool(jnp.allclose(up, up_ref, atol=3e-2, rtol=3e-2))
    assert bool(jnp.allclose(W, W_ref, atol=3e-2, rtol=3e-2))

    print("KERNEL_OK")
</pallas_src>

<mosaic_0001>
module attributes {stable_mosaic.version = 11 : i64} {
  func.func @kernel(%arg0: i32, %arg1: memref<1x130x32xbf16, #tpu.memory_space<vmem>>, %arg2: memref<3x32x8xbf16, #tpu.memory_space<vmem>>, %arg3: memref<3x32x8xbf16, #tpu.memory_space<vmem>>, %arg4: memref<1x8xf32, #tpu.memory_space<vmem>>, %arg5: memref<1x8xf32, #tpu.memory_space<vmem>>, %arg6: memref<1x8xf32, #tpu.memory_space<vmem>>, %arg7: memref<1x8xf32, #tpu.memory_space<vmem>>, %arg8: memref<8x8xbf16, #tpu.memory_space<vmem>>, %arg9: memref<8x8xbf16, #tpu.memory_space<vmem>>, %arg10: memref<1x16xf32, #tpu.memory_space<vmem>>, %arg11: memref<1x16x128xf32, #tpu.memory_space<vmem>>) attributes {dimension_semantics = [#tpu.dimension_semantics<parallel>], iteration_bounds = array<i64: 2>, scalar_prefetch = 0 : i64, scratch_operands = 0 : i64, tpu.core_type = #tpu.core_type<tc>, window_params = [{transform_indices = @transform_0, window_bounds = array<i64: 1, 130, 32>}, {pipeline_mode = #tpu.pipeline_mode<synchronous>, transform_indices = @transform_1, window_bounds = array<i64: 3, 32, 8>}, {pipeline_mode = #tpu.pipeline_mode<synchronous>, transform_indices = @transform_2, window_bounds = array<i64: 3, 32, 8>}, {pipeline_mode = #tpu.pipeline_mode<synchronous>, transform_indices = @transform_3, window_bounds = array<i64: 1, 8>}, {pipeline_mode = #tpu.pipeline_mode<synchronous>, transform_indices = @transform_4, window_bounds = array<i64: 1, 8>}, {pipeline_mode = #tpu.pipeline_mode<synchronous>, transform_indices = @transform_5, window_bounds = array<i64: 1, 8>}, {pipeline_mode = #tpu.pipeline_mode<synchronous>, transform_indices = @transform_6, window_bounds = array<i64: 1, 8>}, {pipeline_mode = #tpu.pipeline_mode<synchronous>, transform_indices = @transform_7, window_bounds = array<i64: 8, 8>}, {pipeline_mode = #tpu.pipeline_mode<synchronous>, transform_indices = @transform_8, window_bounds = array<i64: 8, 8>}, {pipeline_mode = #tpu.pipeline_mode<synchronous>, transform_indices = @transform_9, window_bounds = array<i64: 1, 16>}, {transform_indices = @transform_10, window_bounds = array<i64: 1, 16, 128>}]} {
    %c0 = arith.constant 0 : index
    %c0_0 = arith.constant 0 : index
    %c0_1 = arith.constant 0 : index
    %0 = vector.load %arg1[%c0, %c0_0, %c0_1] : memref<1x130x32xbf16, #tpu.memory_space<vmem>>, vector<1x130x32xbf16>
    %1 = vector.shape_cast %0 : vector<1x130x32xbf16> to vector<130x32xbf16>
    %c0_2 = arith.constant 0 : index
    %c0_3 = arith.constant 0 : index
    %2 = vector.load %arg4[%c0_2, %c0_3] : memref<1x8xf32, #tpu.memory_space<vmem>>, vector<1x8xf32>
    %c0_4 = arith.constant 0 : index
    %c0_5 = arith.constant 0 : index
    %3 = vector.load %arg5[%c0_4, %c0_5] : memref<1x8xf32, #tpu.memory_space<vmem>>, vector<1x8xf32>
    %4 = vector.extract_strided_slice %1 {offsets = [0, 0], sizes = [128, 32], strides = [1, 1]} : vector<130x32xbf16> to vector<128x32xbf16>
    %c0_6 = arith.constant 0 : index
    %c0_7 = arith.constant 0 : index
    %c0_8 = arith.constant 0 : index
    %5 = vector.load %arg2[%c0_6, %c0_7, %c0_8] : memref<3x32x8xbf16, #tpu.memory_space<vmem>>, vector<1x32x8xbf16>
    %6 = vector.shape_cast %5 : vector<1x32x8xbf16> to vector<32x8xbf16>
    %cst = arith.constant dense<0.000000e+00> : vector<128x8xf32>
    %7 = tpu.matmul %4, %6, %cst {dimension_numbers = #tpu.dot_dimension_numbers<[1], [0], [0], [1], [0, 0, 1, 1], [], []>} : vector<128x32xbf16>, vector<32x8xbf16>, vector<128x8xf32> -> vector<128x8xf32>
    %8 = vector.extract_strided_slice %1 {offsets = [1, 0], sizes = [128, 32], strides = [1, 1]} : vector<130x32xbf16> to vector<128x32xbf16>
    %c1 = arith.constant 1 : index
    %c0_9 = arith.constant 0 : index
    %c0_10 = arith.constant 0 : index
    %9 = vector.load %arg2[%c1, %c0_9, %c0_10] : memref<3x32x8xbf16, #tpu.memory_space<vmem>>, vector<1x32x8xbf16>
    %10 = vector.shape_cast %9 : vector<1x32x8xbf16> to vector<32x8xbf16>
    %cst_11 = arith.constant dense<0.000000e+00> : vector<128x8xf32>
    %11 = tpu.matmul %8, %10, %cst_11 {dimension_numbers = #tpu.dot_dimension_numbers<[1], [0], [0], [1], [0, 0, 1, 1], [], []>} : vector<128x32xbf16>, vector<32x8xbf16>, vector<128x8xf32> -> vector<128x8xf32>
    %12 = arith.addf %7, %11 : vector<128x8xf32>
    %13 = vector.extract_strided_slice %1 {offsets = [2, 0], sizes = [128, 32], strides = [1, 1]} : vector<130x32xbf16> to vector<128x32xbf16>
    %c2 = arith.constant 2 : index
    %c0_12 = arith.constant 0 : index
    %c0_13 = arith.constant 0 : index
    %14 = vector.load %arg2[%c2, %c0_12, %c0_13] : memref<3x32x8xbf16, #tpu.memory_space<vmem>>, vector<1x32x8xbf16>
    %15 = vector.shape_cast %14 : vector<1x32x8xbf16> to vector<32x8xbf16>
    %cst_14 = arith.constant dense<0.000000e+00> : vector<128x8xf32>
    %16 = tpu.matmul %13, %15, %cst_14 {dimension_numbers = #tpu.dot_dimension_numbers<[1], [0], [0], [1], [0, 0, 1, 1], [], []>} : vector<128x32xbf16>, vector<32x8xbf16>, vector<128x8xf32> -> vector<128x8xf32>
    %17 = arith.addf %12, %16 : vector<128x8xf32>
    %18 = vector.broadcast %2 : vector<1x8xf32> to vector<128x8xf32>
    %19 = arith.mulf %17, %18 : vector<128x8xf32>
    %20 = vector.broadcast %3 : vector<1x8xf32> to vector<128x8xf32>
    %21 = arith.addf %19, %20 : vector<128x8xf32>
    %22 = arith.negf %21 : vector<128x8xf32>
    %23 = math.exp %22 : vector<128x8xf32>
    %cst_15 = arith.constant 1.000000e+00 : f32
    %24 = vector.broadcast %cst_15 : f32 to vector<128x8xf32>
    %25 = arith.addf %24, %23 : vector<128x8xf32>
    %26 = arith.divf %24, %25 : vector<128x8xf32>
    %27 = arith.mulf %21, %26 : vector<128x8xf32>
    %cst_16 = arith.constant dense<0.000000e+00> : vector<128xf32>
    %28 = vector.multi_reduction <add>, %27, %cst_16 [1] : vector<128x8xf32> to vector<128xf32>
    %29 = vector.shape_cast %28 : vector<128xf32> to vector<128x1xf32>
    %cst_17 = arith.constant 8.000000e+00 : f32
    %30 = vector.broadcast %cst_17 : f32 to vector<128x1xf32>
    %31 = arith.divf %29, %30 : vector<128x1xf32>
    %32 = vector.broadcast %31 : vector<128x1xf32> to vector<128x8xf32>
    %33 = arith.subf %27, %32 : vector<128x8xf32>
    %34 = arith.mulf %33, %33 : vector<128x8xf32>
    %cst_18 = arith.constant dense<0.000000e+00> : vector<128xf32>
    %35 = vector.multi_reduction <add>, %34, %cst_18 [1] : vector<128x8xf32> to vector<128xf32>
    %36 = vector.shape_cast %35 : vector<128xf32> to vector<128x1xf32>
    %cst_19 = arith.constant 8.000000e+00 : f32
    %37 = vector.broadcast %cst_19 : f32 to vector<128x1xf32>
    %38 = arith.divf %36, %37 : vector<128x1xf32>
    %39 = vector.broadcast %31 : vector<128x1xf32> to vector<128x8xf32>
    %40 = arith.subf %27, %39 : vector<128x8xf32>
    %cst_20 = arith.constant 9.99999974E-6 : f32
    %41 = vector.broadcast %cst_20 : f32 to vector<128x1xf32>
    %42 = arith.addf %38, %41 : vector<128x1xf32>
    %43 = math.rsqrt %42 : vector<128x1xf32>
    %44 = vector.broadcast %43 : vector<128x1xf32> to vector<128x8xf32>
    %45 = arith.mulf %40, %44 : vector<128x8xf32>
    %46 = arith.truncf %45 : vector<128x8xf32> to vector<128x8xbf16>
    %c0_21 = arith.constant 0 : index
    %c0_22 = arith.constant 0 : index
    %47 = vector.load %arg8[%c0_21, %c0_22] : memref<8x8xbf16, #tpu.memory_space<vmem>>, vector<8x8xbf16>
    %cst_23 = arith.constant dense<0.000000e+00> : vector<128x8xf32>
    %48 = tpu.matmul %46, %47, %cst_23 {dimension_numbers = #tpu.dot_dimension_numbers<[1], [0], [0], [1], [0, 0, 1, 1], [], []>} : vector<128x8xbf16>, vector<8x8xbf16>, vector<128x8xf32> -> vector<128x8xf32>
    %c0_24 = arith.constant 0 : index
    %c0_25 = arith.constant 0 : index
    %49 = vector.load %arg6[%c0_24, %c0_25] : memref<1x8xf32, #tpu.memory_space<vmem>>, vector<1x8xf32>
    %c0_26 = arith.constant 0 : index
    %c0_27 = arith.constant 0 : index
    %50 = vector.load %arg7[%c0_26, %c0_27] : memref<1x8xf32, #tpu.memory_space<vmem>>, vector<1x8xf32>
    %51 = vector.extract_strided_slice %1 {offsets = [0, 0], sizes = [128, 32], strides = [1, 1]} : vector<130x32xbf16> to vector<128x32xbf16>
    %c0_28 = arith.constant 0 : index
    %c0_29 = arith.constant 0 : index
    %c0_30 = arith.constant 0 : index
    %52 = vector.load %arg3[%c0_28, %c0_29, %c0_30] : memref<3x32x8xbf16, #tpu.memory_space<vmem>>, vector<1x32x8xbf16>
    %53 = vector.shape_cast %52 : vector<1x32x8xbf16> to vector<32x8xbf16>
    %cst_31 = arith.constant dense<0.000000e+00> : vector<128x8xf32>
    %54 = tpu.matmul %51, %53, %cst_31 {dimension_numbers = #tpu.dot_dimension_numbers<[1], [0], [0], [1], [0, 0, 1, 1], [], []>} : vector<128x32xbf16>, vector<32x8xbf16>, vector<128x8xf32> -> vector<128x8xf32>
    %55 = vector.extract_strided_slice %1 {offsets = [1, 0], sizes = [128, 32], strides = [1, 1]} : vector<130x32xbf16> to vector<128x32xbf16>
    %c1_32 = arith.constant 1 : index
    %c0_33 = arith.constant 0 : index
    %c0_34 = arith.constant 0 : index
    %56 = vector.load %arg3[%c1_32, %c0_33, %c0_34] : memref<3x32x8xbf16, #tpu.memory_space<vmem>>, vector<1x32x8xbf16>
    %57 = vector.shape_cast %56 : vector<1x32x8xbf16> to vector<32x8xbf16>
    %cst_35 = arith.constant dense<0.000000e+00> : vector<128x8xf32>
    %58 = tpu.matmul %55, %57, %cst_35 {dimension_numbers = #tpu.dot_dimension_numbers<[1], [0], [0], [1], [0, 0, 1, 1], [], []>} : vector<128x32xbf16>, vector<32x8xbf16>, vector<128x8xf32> -> vector<128x8xf32>
    %59 = arith.addf %54, %58 : vector<128x8xf32>
    %60 = vector.extract_strided_slice %1 {offsets = [2, 0], sizes = [128, 32], strides = [1, 1]} : vector<130x32xbf16> to vector<128x32xbf16>
    %c2_36 = arith.constant 2 : index
    %c0_37 = arith.constant 0 : index
    %c0_38 = arith.constant 0 : index
    %61 = vector.load %arg3[%c2_36, %c0_37, %c0_38] : memref<3x32x8xbf16, #tpu.memory_space<vmem>>, vector<1x32x8xbf16>
    %62 = vector.shape_cast %61 : vector<1x32x8xbf16> to vector<32x8xbf16>
    %cst_39 = arith.constant dense<0.000000e+00> : vector<128x8xf32>
    %63 = tpu.matmul %60, %62, %cst_39 {dimension_numbers = #tpu.dot_dimension_numbers<[1], [0], [0], [1], [0, 0, 1, 1], [], []>} : vector<128x32xbf16>, vector<32x8xbf16>, vector<128x8xf32> -> vector<128x8xf32>
    %64 = arith.addf %59, %63 : vector<128x8xf32>
    %65 = vector.broadcast %49 : vector<1x8xf32> to vector<128x8xf32>
    %66 = arith.mulf %64, %65 : vector<128x8xf32>
    %67 = vector.broadcast %50 : vector<1x8xf32> to vector<128x8xf32>
    %68 = arith.addf %66, %67 : vector<128x8xf32>
    %69 = arith.negf %68 : vector<128x8xf32>
    %70 = math.exp %69 : vector<128x8xf32>
    %cst_40 = arith.constant 1.000000e+00 : f32
    %71 = vector.broadcast %cst_40 : f32 to vector<128x8xf32>
    %72 = arith.addf %71, %70 : vector<128x8xf32>
    %73 = arith.divf %71, %72 : vector<128x8xf32>
    %74 = arith.mulf %68, %73 : vector<128x8xf32>
    %cst_41 = arith.constant dense<0.000000e+00> : vector<128xf32>
    %75 = vector.multi_reduction <add>, %74, %cst_41 [1] : vector<128x8xf32> to vector<128xf32>
    %76 = vector.shape_cast %75 : vector<128xf32> to vector<128x1xf32>
    %cst_42 = arith.constant 8.000000e+00 : f32
    %77 = vector.broadcast %cst_42 : f32 to vector<128x1xf32>
    %78 = arith.divf %76, %77 : vector<128x1xf32>
    %79 = vector.broadcast %78 : vector<128x1xf32> to vector<128x8xf32>
    %80 = arith.subf %74, %79 : vector<128x8xf32>
    %81 = arith.mulf %80, %80 : vector<128x8xf32>
    %cst_43 = arith.constant dense<0.000000e+00> : vector<128xf32>
    %82 = vector.multi_reduction <add>, %81, %cst_43 [1] : vector<128x8xf32> to vector<128xf32>
    %83 = vector.shape_cast %82 : vector<128xf32> to vector<128x1xf32>
    %cst_44 = arith.constant 8.000000e+00 : f32
    %84 = vector.broadcast %cst_44 : f32 to vector<128x1xf32>
    %85 = arith.divf %83, %84 : vector<128x1xf32>
    %86 = vector.broadcast %78 : vector<128x1xf32> to vector<128x8xf32>
    %87 = arith.subf %74, %86 : vector<128x8xf32>
    %cst_45 = arith.constant 9.99999974E-6 : f32
    %88 = vector.broadcast %cst_45 : f32 to vector<128x1xf32>
    %89 = arith.addf %85, %88 : vector<128x1xf32>
    %90 = math.rsqrt %89 : vector<128x1xf32>
    %91 = vector.broadcast %90 : vector<128x1xf32> to vector<128x8xf32>
    %92 = arith.mulf %87, %91 : vector<128x8xf32>
    %93 = arith.truncf %92 : vector<128x8xf32> to vector<128x8xbf16>
    %c0_46 = arith.constant 0 : index
    %c0_47 = arith.constant 0 : index
    %94 = vector.load %arg9[%c0_46, %c0_47] : memref<8x8xbf16, #tpu.memory_space<vmem>>, vector<8x8xbf16>
    %cst_48 = arith.constant dense<0.000000e+00> : vector<128x8xf32>
    %95 = tpu.matmul %93, %94, %cst_48 {dimension_numbers = #tpu.dot_dimension_numbers<[1], [0], [0], [1], [0, 0, 1, 1], [], []>} : vector<128x8xbf16>, vector<8x8xbf16>, vector<128x8xf32> -> vector<128x8xf32>
    %96 = tpu.concatenate %48, %95 in 1 : vector<128x8xf32>, vector<128x8xf32> -> vector<128x16xf32>
    %c0_49 = arith.constant 0 : index
    %c0_50 = arith.constant 0 : index
    %97 = vector.load %arg10[%c0_49, %c0_50] : memref<1x16xf32, #tpu.memory_space<vmem>>, vector<1x16xf32>
    %98 = vector.broadcast %97 : vector<1x16xf32> to vector<128x16xf32>
    %99 = arith.addf %96, %98 : vector<128x16xf32>
    %100 = tpu.transpose %99, [1, 0] : vector<128x16xf32> -> vector<16x128xf32>
    %c0_51 = arith.constant 0 : index
    %c0_52 = arith.constant 0 : index
    %c0_53 = arith.constant 0 : index
    %101 = vector.load %arg11[%c0_51, %c0_52, %c0_53] : memref<1x16x128xf32, #tpu.memory_space<vmem>>, vector<1x16x128xf32>
    %102 = vector.shape_cast %101 : vector<1x16x128xf32> to vector<16x128xf32>
    %103 = vector.shape_cast %100 : vector<16x128xf32> to vector<1x16x128xf32>
    tpu.vector_store %arg11[%c0_51, %c0_52, %c0_53], %103 {strides = array<i32>} : memref<1x16x128xf32, #tpu.memory_space<vmem>>, vector<1x16x128xf32>,
    return
  }
  func.func @transform_0(%arg0: i32) -> (i32, i32, i32) {
    %c0_i32 = arith.constant 0 : i32
    %c0_i32_0 = arith.constant 0 : i32
    %c0_i32_1 = arith.constant 0 : i32
    return %arg0, %c0_i32, %c0_i32_0 : i32, i32, i32
  }
  func.func @transform_1(%arg0: i32) -> (i32, i32, i32) {
    %c0_i32 = arith.constant 0 : i32
    %c0_i32_0 = arith.constant 0 : i32
    %c0_i32_1 = arith.constant 0 : i32
    %c0_i32_2 = arith.constant 0 : i32
    return %c0_i32, %c0_i32_0, %c0_i32_1 : i32, i32, i32
  }
  func.func @transform_2(%arg0: i32) -> (i32, i32, i32) {
    %c0_i32 = arith.constant 0 : i32
    %c0_i32_0 = arith.constant 0 : i32
    %c0_i32_1 = arith.constant 0 : i32
    %c0_i32_2 = arith.constant 0 : i32
    return %c0_i32, %c0_i32_0, %c0_i32_1 : i32, i32, i32
  }
  func.func @transform_3(%arg0: i32) -> (i32, i32) {
    %c0_i32 = arith.constant 0 : i32
    %c0_i32_0 = arith.constant 0 : i32
    %c0_i32_1 = arith.constant 0 : i32
    return %c0_i32, %c0_i32_0 : i32, i32
  }
  func.func @transform_4(%arg0: i32) -> (i32, i32) {
    %c0_i32 = arith.constant 0 : i32
    %c0_i32_0 = arith.constant 0 : i32
    %c0_i32_1 = arith.constant 0 : i32
    return %c0_i32, %c0_i32_0 : i32, i32
  }
  func.func @transform_5(%arg0: i32) -> (i32, i32) {
    %c0_i32 = arith.constant 0 : i32
    %c0_i32_0 = arith.constant 0 : i32
    %c0_i32_1 = arith.constant 0 : i32
    return %c0_i32, %c0_i32_0 : i32, i32
  }
  func.func @transform_6(%arg0: i32) -> (i32, i32) {
    %c0_i32 = arith.constant 0 : i32
    %c0_i32_0 = arith.constant 0 : i32
    %c0_i32_1 = arith.constant 0 : i32
    return %c0_i32, %c0_i32_0 : i32, i32
  }
  func.func @transform_7(%arg0: i32) -> (i32, i32) {
    %c0_i32 = arith.constant 0 : i32
    %c0_i32_0 = arith.constant 0 : i32
    %c0_i32_1 = arith.constant 0 : i32
    return %c0_i32, %c0_i32_0 : i32, i32
  }
  func.func @transform_8(%arg0: i32) -> (i32, i32) {
    %c0_i32 = arith.constant 0 : i32
    %c0_i32_0 = arith.constant 0 : i32
    %c0_i32_1 = arith.constant 0 : i32
    return %c0_i32, %c0_i32_0 : i32, i32
  }
  func.func @transform_9(%arg0: i32) -> (i32, i32) {
    %c0_i32 = arith.constant 0 : i32
    %c0_i32_0 = arith.constant 0 : i32
    %c0_i32_1 = arith.constant 0 : i32
    return %c0_i32, %c0_i32_0 : i32, i32
  }
  func.func @transform_10(%arg0: i32) -> (i32, i32, i32) {
    %c0_i32 = arith.constant 0 : i32
    %c0_i32_0 = arith.constant 0 : i32
    %c0_i32_1 = arith.constant 0 : i32
    return %arg0, %c0_i32, %c0_i32_0 : i32, i32, i32
  }
}

</mosaic_0001>

<llo_original>
// kernel: tpu_custom_call.1
$region0: #{tpu_custom_call.1}
  #allocation0 [shape = 'u32[]', space=smem, size = 0x4, offset = 0x4, fixed_abs, tag = 'smem constant byte address 0x4 - core index']
  #allocation1 [shape = 'u32[144,128]{1,0:T(1,128)}', space=vmem, size = 0x12000, scoped, tag = 'internal scratch']
  %s0 = inlined_call_operand.vmem [shape: bf16[2,130,32], index: 0, kind: input, shape index: {}]
  %s1 = inlined_call_operand.vmem [shape: bf16[3,32,8], index: 1, kind: input, shape index: {}]
  %s2 = inlined_call_operand.vmem [shape: bf16[3,32,8], index: 2, kind: input, shape index: {}]
  %s3 = inlined_call_operand.vmem [shape: f32[1,8], index: 3, kind: input, shape index: {}]
  %s4 = inlined_call_operand.vmem [shape: f32[1,8], index: 4, kind: input, shape index: {}]
  %s5 = inlined_call_operand.vmem [shape: f32[1,8], index: 5, kind: input, shape index: {}]
  %s6 = inlined_call_operand.vmem [shape: f32[1,8], index: 6, kind: input, shape index: {}]
  %s7 = inlined_call_operand.vmem [shape: bf16[8,8], index: 7, kind: input, shape index: {}]
  %s8 = inlined_call_operand.vmem [shape: bf16[8,8], index: 8, kind: input, shape index: {}]
  %s9 = inlined_call_operand.vmem [shape: f32[1,16], index: 9, kind: input, shape index: {}]
  %s10 = inlined_call_operand.hbm [shape: f32[2,16,128], index: 10, kind: output, shape index: {}]
  %s11 = sld [smem:[#allocation0]]
  $region73: #{tpu_custom_call.1} parent=0
    _
  %s13 = ssub.s32 1, %s11
  %s14 = scalar_select 0, %s13, %s11
  $region1: #{tpu_custom_call.1} parent=0
    #allocation2 [shape = 'u8[16384]{0}', space=vmem, size = 0x4000, scoped, tag = 'output window, operand 0']
    #allocation3 [shape = 's32[2]{0}', space=sflag, size = 0x8, scoped, tag = 'scoped memory for tpu_custom_call.1']
    %15 = vsyncpa [#allocation3], 0
    %s16 = scalar_lea.sflag [#allocation3], 1
    %17 = vsyncpa %s16, 0
    loop: start=0, step=1, limit=4
    $region2: #{tpu_custom_call.1} parent=1 // loop_pre_header
      _
    $region3: #{tpu_custom_call.1} parent=1 // loop_header
      %s19 = sphi 0, %s23
      %p20 = scmp.ge.s32.totalorder %s19, 4
      %s29 = sphi 0, %s31
      %s32 = sphi 0, %s29
      %s33 = sphi 0, %s32
      %s49 = sphi 0, %s33
      %s53 = sphi 0, %s53
      %s55 = sphi 0, %s53
      %s56 = sphi 0, %s55
      %s70 = sphi 0, %s56
      %s74 = sphi 0, %s74
      %s76 = sphi 0, %s74
      %s77 = sphi 0, %s76
      %s91 = sphi 0, %s77
      %s95 = sphi 0, %s95
      %s97 = sphi 0, %s95
      %s98 = sphi 0, %s97
      %s112 = sphi 0, %s98
      %s116 = sphi 0, %s116
      %s118 = sphi 0, %s116
      %s119 = sphi 0, %s118
      %s133 = sphi 0, %s119
      %s137 = sphi 0, %s137
      %s139 = sphi 0, %s137
      %s140 = sphi 0, %s139
      %s154 = sphi 0, %s140
      %s158 = sphi 0, %s158
      %s160 = sphi 0, %s158
      %s161 = sphi 0, %s160
      %s175 = sphi 0, %s161
      %s179 = sphi 0, %s179
      %s181 = sphi 0, %s179
      %s182 = sphi 0, %s181
      %s196 = sphi 0, %s182
      %s200 = sphi 0, %s200
      %s202 = sphi 0, %s200
      %s203 = sphi 0, %s202
      %s217 = sphi 0, %s203
      %s221 = sphi 0, %s221
      %s223 = sphi 0, %s221
      %s224 = sphi 0, %s223
      %s238 = sphi 0, %s224
      %s244 = sphi 0, %s246
      %s247 = sphi 0, %s244
      %s248 = sphi 0, %s247
      %s264 = sphi 0, %s248
    $region4: #{tpu_custom_call.1} parent=1 // loop_header_branch
      %22 = sbr.rel (%p20) target = $region8
    $region5: #{tpu_custom_call.1} parent=1 // loop_body
      %s24 = ssub.s32 %s19, 1
      %s25 = ssub.s32 %s19, 2
      %s26 = sadd.s32 %s19, 1
      %s27 = ssub.s32 %s19, %s26
      %p28 = scmp.eq.s32.totalorder %s27, 0
      %s30 = sadd.s32 %s29, 1
      %s31 = scalar_select %p28, %s29, %s30
      %p34 = pneg %p28
      %p35 = scmp.eq.s32.totalorder %s19, 1
      %p36 = por %p34, %p35
      %p37 = scmp.ne.s32.totalorder %s29, %s32
      %p38 = scmp.eq.s32.totalorder %s19, 0
      %p39 = por %p37, %p38
      %p40 = scmp.ne.s32.totalorder %s29, %s32
      %p41 = scmp.eq.s32.totalorder %s24, 1
      %p42 = por %p40, %p41
      %p43 = scmp.ne.s32.totalorder %s32, %s33
      %p44 = scmp.eq.s32.totalorder %s24, 0
      %p45 = por %p43, %p44
      %p46 = scmp.ne.s32.totalorder %s32, %s33
      %p47 = scmp.eq.s32.totalorder %s25, 1
      %p48 = por %p46, %p47
      %p50 = scmp.ne.s32.totalorder %s33, %s49
      %p51 = scmp.eq.s32.totalorder %s25, 0
      %p52 = por %p50, %p51
      %s54 = sadd.s32 %s53, 1
      %p57 = scmp.eq.s32.totalorder %s19, 1
      %p58 = scmp.ne.s32.totalorder %s53, %s55
      %p59 = scmp.eq.s32.totalorder %s19, 0
      %p60 = por %p58, %p59
      %p61 = scmp.ne.s32.totalorder %s53, %s55
      %p62 = scmp.eq.s32.totalorder %s24, 1
      %p63 = por %p61, %p62
      %p64 = scmp.ne.s32.totalorder %s55, %s56
      %p65 = scmp.eq.s32.totalorder %s24, 0
      %p66 = por %p64, %p65
      %p67 = scmp.ne.s32.totalorder %s55, %s56
      %p68 = scmp.eq.s32.totalorder %s25, 1
      %p69 = por %p67, %p68
      %p71 = scmp.ne.s32.totalorder %s56, %s70
      %p72 = scmp.eq.s32.totalorder %s25, 0
      %p73 = por %p71, %p72
      %s75 = sadd.s32 %s74, 1
      %p78 = scmp.eq.s32.totalorder %s19, 1
      %p79 = scmp.ne.s32.totalorder %s74, %s76
      %p80 = scmp.eq.s32.totalorder %s19, 0
      %p81 = por %p79, %p80
      %p82 = scmp.ne.s32.totalorder %s74, %s76
      %p83 = scmp.eq.s32.totalorder %s24, 1
      %p84 = por %p82, %p83
      %p85 = scmp.ne.s32.totalorder %s76, %s77
      %p86 = scmp.eq.s32.totalorder %s24, 0
      %p87 = por %p85, %p86
      %p88 = scmp.ne.s32.totalorder %s76, %s77
      %p89 = scmp.eq.s32.totalorder %s25, 1
      %p90 = por %p88, %p89
      %p92 = scmp.ne.s32.totalorder %s77, %s91
      %p93 = scmp.eq.s32.totalorder %s25, 0
      %p94 = por %p92, %p93
      %s96 = sadd.s32 %s95, 1
      %p99 = scmp.eq.s32.totalorder %s19, 1
      %p100 = scmp.ne.s32.totalorder %s95, %s97
      %p101 = scmp.eq.s32.totalorder %s19, 0
      %p102 = por %p100, %p101
      %p103 = scmp.ne.s32.totalorder %s95, %s97
      %p104 = scmp.eq.s32.totalorder %s24, 1
      %p105 = por %p103, %p104
      %p106 = scmp.ne.s32.totalorder %s97, %s98
      %p107 = scmp.eq.s32.totalorder %s24, 0
      %p108 = por %p106, %p107
      %p109 = scmp.ne.s32.totalorder %s97, %s98
      %p110 = scmp.eq.s32.totalorder %s25, 1
      %p111 = por %p109, %p110
      %p113 = scmp.ne.s32.totalorder %s98, %s112
      %p114 = scmp.eq.s32.totalorder %s25, 0
      %p115 = por %p113, %p114
      %s117 = sadd.s32 %s116, 1
      %p120 = scmp.eq.s32.totalorder %s19, 1
      %p121 = scmp.ne.s32.totalorder %s116, %s118
      %p122 = scmp.eq.s32.totalorder %s19, 0
      %p123 = por %p121, %p122
      %p124 = scmp.ne.s32.totalorder %s116, %s118
      %p125 = scmp.eq.s32.totalorder %s24, 1
      %p126 = por %p124, %p125
      %p127 = scmp.ne.s32.totalorder %s118, %s119
      %p128 = scmp.eq.s32.totalorder %s24, 0
      %p129 = por %p127, %p128
      %p130 = scmp.ne.s32.totalorder %s118, %s119
      %p131 = scmp.eq.s32.totalorder %s25, 1
      %p132 = por %p130, %p131
      %p134 = scmp.ne.s32.totalorder %s119, %s133
      %p135 = scmp.eq.s32.totalorder %s25, 0
      %p136 = por %p134, %p135
      %s138 = sadd.s32 %s137, 1
      %p141 = scmp.eq.s32.totalorder %s19, 1
      %p142 = scmp.ne.s32.totalorder %s137, %s139
      %p143 = scmp.eq.s32.totalorder %s19, 0
      %p144 = por %p142, %p143
      %p145 = scmp.ne.s32.totalorder %s137, %s139
      %p146 = scmp.eq.s32.totalorder %s24, 1
      %p147 = por %p145, %p146
      %p148 = scmp.ne.s32.totalorder %s139, %s140
      %p149 = scmp.eq.s32.totalorder %s24, 0
      %p150 = por %p148, %p149
      %p151 = scmp.ne.s32.totalorder %s139, %s140
      %p152 = scmp.eq.s32.totalorder %s25, 1
      %p153 = por %p151, %p152
      %p155 = scmp.ne.s32.totalorder %s140, %s154
      %p156 = scmp.eq.s32.totalorder %s25, 0
      %p157 = por %p155, %p156
      %s159 = sadd.s32 %s158, 1
      %p162 = scmp.eq.s32.totalorder %s19, 1
      %p163 = scmp.ne.s32.totalorder %s158, %s160
      %p164 = scmp.eq.s32.totalorder %s19, 0
      %p165 = por %p163, %p164
      %p166 = scmp.ne.s32.totalorder %s158, %s160
      %p167 = scmp.eq.s32.totalorder %s24, 1
      %p168 = por %p166, %p167
      %p169 = scmp.ne.s32.totalorder %s160, %s161
      %p170 = scmp.eq.s32.totalorder %s24, 0
      %p171 = por %p169, %p170
      %p172 = scmp.ne.s32.totalorder %s160, %s161
      %p173 = scmp.eq.s32.totalorder %s25, 1
      %p174 = por %p172, %p173
      %p176 = scmp.ne.s32.totalorder %s161, %s175
      %p177 = scmp.eq.s32.totalorder %s25, 0
      %p178 = por %p176, %p177
      %s180 = sadd.s32 %s179, 1
      %p183 = scmp.eq.s32.totalorder %s19, 1
      %p184 = scmp.ne.s32.totalorder %s179, %s181
      %p185 = scmp.eq.s32.totalorder %s19, 0
      %p186 = por %p184, %p185
      %p187 = scmp.ne.s32.totalorder %s179, %s181
      %p188 = scmp.eq.s32.totalorder %s24, 1
      %p189 = por %p187, %p188
      %p190 = scmp.ne.s32.totalorder %s181, %s182
      %p191 = scmp.eq.s32.totalorder %s24, 0
      %p192 = por %p190, %p191
      %p193 = scmp.ne.s32.totalorder %s181, %s182
      %p194 = scmp.eq.s32.totalorder %s25, 1
      %p195 = por %p193, %p194
      %p197 = scmp.ne.s32.totalorder %s182, %s196
      %p198 = scmp.eq.s32.totalorder %s25, 0
      %p199 = por %p197, %p198
      %s201 = sadd.s32 %s200, 1
      %p204 = scmp.eq.s32.totalorder %s19, 1
      %p205 = scmp.ne.s32.totalorder %s200, %s202
      %p206 = scmp.eq.s32.totalorder %s19, 0
      %p207 = por %p205, %p206
      %p208 = scmp.ne.s32.totalorder %s200, %s202
      %p209 = scmp.eq.s32.totalorder %s24, 1
      %p210 = por %p208, %p209
      %p211 = scmp.ne.s32.totalorder %s202, %s203
      %p212 = scmp.eq.s32.totalorder %s24, 0
      %p213 = por %p211, %p212
      %p214 = scmp.ne.s32.totalorder %s202, %s203
      %p215 = scmp.eq.s32.totalorder %s25, 1
      %p216 = por %p214, %p215
      %p218 = scmp.ne.s32.totalorder %s203, %s217
      %p219 = scmp.eq.s32.totalorder %s25, 0
      %p220 = por %p218, %p219
      %s222 = sadd.s32 %s221, 1
      %p225 = scmp.eq.s32.totalorder %s19, 1
      %p226 = scmp.ne.s32.totalorder %s221, %s223
      %p227 = scmp.eq.s32.totalorder %s19, 0
      %p228 = por %p226, %p227
      %p229 = scmp.ne.s32.totalorder %s221, %s223
      %p230 = scmp.eq.s32.totalorder %s24, 1
      %p231 = por %p229, %p230
      %p232 = scmp.ne.s32.totalorder %s223, %s224
      %p233 = scmp.eq.s32.totalorder %s24, 0
      %p234 = por %p232, %p233
      %p235 = scmp.ne.s32.totalorder %s223, %s224
      %p236 = scmp.eq.s32.totalorder %s25, 1
      %p237 = por %p235, %p236
      %p239 = scmp.ne.s32.totalorder %s224, %s238
      %p240 = scmp.eq.s32.totalorder %s25, 0
      %p241 = por %p239, %p240
      %s242 = ssub.s32 %s19, %s26
      %p243 = scmp.eq.s32.totalorder %s242, 0
      %s245 = sadd.s32 %s244, 1
      %s246 = scalar_select %p243, %s244, %s245
      %p249 = pneg %p243
      %p250 = scmp.eq.s32.totalorder %s19, 1
      %p251 = por %p249, %p250
      %p252 = scmp.ne.s32.totalorder %s244, %s247
      %p253 = scmp.eq.s32.totalorder %s19, 0
      %p254 = por %p252, %p253
      %p255 = scmp.ne.s32.totalorder %s244, %s247
      %p256 = scmp.eq.s32.totalorder %s24, 1
      %p257 = por %p255, %p256
      %p258 = scmp.ne.s32.totalorder %s247, %s248
      %p259 = scmp.eq.s32.totalorder %s24, 0
      %p260 = por %p258, %p259
      %p261 = scmp.ne.s32.totalorder %s247, %s248
      %p262 = scmp.eq.s32.totalorder %s25, 1
      %p263 = por %p261, %p262
      %p265 = scmp.ne.s32.totalorder %s248, %s264
      %p266 = scmp.eq.s32.totalorder %s25, 0
      %p267 = por %p265, %p266
      %p268 = scmp.le.s32.totalorder 1, %s19
      %p269 = scmp.lt.s32.totalorder %s19, 3
      %p270 = pnand %p268, %p269
      %p271 = pneg %p270
      // Predicated region
      $region9: #{tpu_custom_call.1} parent=5 // pred_check
        _
      $region10: #{tpu_custom_call.1} parent=5 // pred_check_branch
        %273 = sbr.rel (%p270) target = $region12
      $region11: #{tpu_custom_call.1} parent=5 // pred_region
        %s274 = ssub.s32 %s19, 1
        // Predicated region
        $region13: #{tpu_custom_call.1} parent=11 // pred_check
          %p275 = pneg %p66
        $region14: #{tpu_custom_call.1} parent=11 // pred_check_branch
          %277 = sbr.rel (%p275) target = $region16
        $region15: #{tpu_custom_call.1} parent=11 // pred_region
          _
        $region16: #{tpu_custom_call.1} parent=11 // pred_fallthru
          _
        // Predicated region
        $region17: #{tpu_custom_call.1} parent=11 // pred_check
          %p278 = pneg %p87
        $region18: #{tpu_custom_call.1} parent=11 // pred_check_branch
          %280 = sbr.rel (%p278) target = $region20
        $region19: #{tpu_custom_call.1} parent=11 // pred_region
          _
        $region20: #{tpu_custom_call.1} parent=11 // pred_fallthru
          _
        // Predicated region
        $region21: #{tpu_custom_call.1} parent=11 // pred_check
          %p281 = pneg %p108
        $region22: #{tpu_custom_call.1} parent=11 // pred_check_branch
          %283 = sbr.rel (%p281) target = $region24
        $region23: #{tpu_custom_call.1} parent=11 // pred_region
          _
        $region24: #{tpu_custom_call.1} parent=11 // pred_fallthru
          _
        // Predicated region
        $region25: #{tpu_custom_call.1} parent=11 // pred_check
          %p284 = pneg %p129
        $region26: #{tpu_custom_call.1} parent=11 // pred_check_branch
          %286 = sbr.rel (%p284) target = $region28
        $region27: #{tpu_custom_call.1} parent=11 // pred_region
          _
        $region28: #{tpu_custom_call.1} parent=11 // pred_fallthru
          _
        // Predicated region
        $region29: #{tpu_custom_call.1} parent=11 // pred_check
          %p287 = pneg %p150
        $region30: #{tpu_custom_call.1} parent=11 // pred_check_branch
          %289 = sbr.rel (%p287) target = $region32
        $region31: #{tpu_custom_call.1} parent=11 // pred_region
          _
        $region32: #{tpu_custom_call.1} parent=11 // pred_fallthru
          _
        // Predicated region
        $region33: #{tpu_custom_call.1} parent=11 // pred_check
          %p290 = pneg %p171
        $region34: #{tpu_custom_call.1} parent=11 // pred_check_branch
          %292 = sbr.rel (%p290) target = $region36
        $region35: #{tpu_custom_call.1} parent=11 // pred_region
          _
        $region36: #{tpu_custom_call.1} parent=11 // pred_fallthru
          _
        // Predicated region
        $region37: #{tpu_custom_call.1} parent=11 // pred_check
          %p293 = pneg %p192
        $region38: #{tpu_custom_call.1} parent=11 // pred_check_branch
          %295 = sbr.rel (%p293) target = $region40
        $region39: #{tpu_custom_call.1} parent=11 // pred_region
          _
        $region40: #{tpu_custom_call.1} parent=11 // pred_fallthru
          _
        // Predicated region
        $region41: #{tpu_custom_call.1} parent=11 // pred_check
          %p296 = pneg %p213
        $region42: #{tpu_custom_call.1} parent=11 // pred_check_branch
          %298 = sbr.rel (%p296) target = $region44
        $region43: #{tpu_custom_call.1} parent=11 // pred_region
          _
        $region44: #{tpu_custom_call.1} parent=11 // pred_fallthru
          _
        // Predicated region
        $region45: #{tpu_custom_call.1} parent=11 // pred_check
          %p299 = pneg %p234
        $region46: #{tpu_custom_call.1} parent=11 // pred_check_branch
          %301 = sbr.rel (%p299) target = $region48
        $region47: #{tpu_custom_call.1} parent=11 // pred_region
          _
        $region48: #{tpu_custom_call.1} parent=11 // pred_fallthru
          _
      $region12: #{tpu_custom_call.1} parent=5 // pred_fallthru
        _
      %p302 = scmp.lt.s32.totalorder %s19, 2
      // Predicated region
      $region49: #{tpu_custom_call.1} parent=5 // pred_check
        %p303 = pneg %p302
      $region50: #{tpu_custom_call.1} parent=5 // pred_check_branch
        %305 = sbr.rel (%p303) target = $region52
      $region51: #{tpu_custom_call.1} parent=5 // pred_region
        // Predicated region
        $region53: #{tpu_custom_call.1} parent=51 // pred_check
          %p306 = pneg %p39
        $region54: #{tpu_custom_call.1} parent=51 // pred_check_branch
          %308 = sbr.rel (%p306) target = $region56
        $region55: #{tpu_custom_call.1} parent=51 // pred_region
          %p309 = scmp.lt.s32.totalorder %s19, 1
          %s310 = scalar_select %p309, %s19, 1
          %s311 = smul.addr %s310, 17
          %s312 = smul.addr %s311, 4
          %s313 = scalar_lea.vmem %s0, %s312
        $region56: #{tpu_custom_call.1} parent=51 // pred_fallthru
          _
      $region52: #{tpu_custom_call.1} parent=5 // pred_fallthru
        _
      %p314 = scmp.le.s32.totalorder 1, %s19
      %p315 = scmp.lt.s32.totalorder %s19, 3
      %p316 = pnand %p314, %p315
      %p317 = pneg %p316
      // Predicated region
      $region57: #{tpu_custom_call.1} parent=5 // pred_check
        _
      $region58: #{tpu_custom_call.1} parent=5 // pred_check_branch
        %319 = sbr.rel (%p316) target = $region60
      $region59: #{tpu_custom_call.1} parent=5 // pred_region
        %s320 = ssub.s32 %s19, 1
        %p321 = scmp.lt.s32.totalorder %s24, 1
        %s322 = scalar_select %p321, %s24, 1
        %s323 = smul.addr %s322, 17
        %s324 = smul.addr %s323, 4
        %s325 = scalar_lea.vmem %s0, %s324
        %p326 = pneg %p45
        %p327 = pneg %p42
        %p328 = pneg %p66
        %p329 = pneg %p63
        %p330 = pneg %p87
        %p331 = pneg %p84
        %p332 = pneg %p108
        %p333 = pneg %p105
        %p334 = pneg %p129
        %p335 = pneg %p126
        %p336 = pneg %p150
        %p337 = pneg %p147
        %p338 = pneg %p171
        %p339 = pneg %p168
        %p340 = pneg %p192
        %p341 = pneg %p189
        %p342 = pneg %p213
        %p343 = pneg %p210
        %p344 = pneg %p234
        %p345 = pneg %p231
        %p346 = pneg %p260
        %p347 = pneg %p257
        %s348 = sand.u32 %s247, 1
        %s349 = scalar_lea.sflag [#allocation3], %s348
        %s350 = sand.u32 %s247, 1
        %s351 = smul.addr %s350, 16
        %s352 = scalar_lea.vmem [#allocation2], %s351
        %p353 = scmp.lt.s32.totalorder %s24, 1
        %s354 = scalar_select %p353, %s24, 1
        %s355 = smul.addr %s354, 17
        %s356 = smul.addr %s355, 4
        %s357 = scalar_lea.vmem %s0, %s356
        %v359 = vld [vmem:[%s357] sm:$0xf]
        %v360 = vld [vmem:[%s357 + $0x4] sm:$0xf]
        %v361 = vld [vmem:[%s357 + $0x8] sm:$0xf]
        %v362 = vld [vmem:[%s357 + $0xc] sm:$0xf]
        %v363 = vld [vmem:[%s357 + $0x10] sm:$0xf]
        %v364 = vld [vmem:[%s357 + $0x14] sm:$0xf]
        %v365 = vld [vmem:[%s357 + $0x18] sm:$0xf]
        %v366 = vld [vmem:[%s357 + $0x1c] sm:$0xf]
        %v367 = vld [vmem:[%s357 + $0x20] sm:$0xf]
        %v368 = vld [vmem:[%s357 + $0x24] sm:$0xf]
        %v369 = vld [vmem:[%s357 + $0x28] sm:$0xf]
        %v370 = vld [vmem:[%s357 + $0x2c] sm:$0xf]
        %v371 = vld [vmem:[%s357 + $0x30] sm:$0xf]
        %v372 = vld [vmem:[%s357 + $0x34] sm:$0xf]
        %v373 = vld [vmem:[%s357 + $0x38] sm:$0xf]
        %v374 = vld [vmem:[%s357 + $0x3c] sm:$0xf]
        %v375 = vld [vmem:[%s357 + $0x40] sm:$0x1]
        %v376 = vld [vmem:[%s3] sm:$0x1]
        %v377 = vld [vmem:[%s4] sm:$0x1]
        %v378 = vld [vmem:[%s1] sm:$0xf]
        %v379 = vld [vmem:[%s1 + $0x4] sm:$0xf]
        %v380 = vld [vmem:[%s1 + $0x8] sm:$0xf]
        %v381 = vld [vmem:[%s1 + $0xc] sm:$0xf]
        %s382 = scalar_lea.vmem %s1, 16
        %v383 = vld [vmem:[%s382] sm:$0xf]
        %v384 = vld [vmem:[%s382 + $0x4] sm:$0xf]
        %v385 = vld [vmem:[%s382 + $0x8] sm:$0xf]
        %v386 = vld [vmem:[%s382 + $0xc] sm:$0xf]
        %v404 = vunpack.c.l.b16 %v359
        %v405 = vunpack.c.l.b16 %v360
        %v406 = vunpack.c.l.b16 %v361
        %v407 = vunpack.c.l.b16 %v362
        %v408 = vunpack.c.l.b16 %v363
        %v409 = vunpack.c.l.b16 %v364
        %v410 = vunpack.c.l.b16 %v365
        %v411 = vunpack.c.l.b16 %v366
        %v412 = vunpack.c.l.b16 %v367
        %v413 = vunpack.c.l.b16 %v368
        %v414 = vunpack.c.l.b16 %v369
        %v415 = vunpack.c.l.b16 %v370
        %v416 = vunpack.c.l.b16 %v371
        %v417 = vunpack.c.l.b16 %v372
        %v418 = vunpack.c.l.b16 %v373
        %v419 = vunpack.c.l.b16 %v374
        %v420 = vunpack.c.l.b16 %v375
        %v421 = vpack.c.b16 %v405, %v404
        %v422 = vpack.c.b16 %v407, %v406
        %v423 = vpack.c.b16 %v409, %v408
        %v424 = vpack.c.b16 %v411, %v410
        %v425 = vpack.c.b16 %v413, %v412
        %v426 = vpack.c.b16 %v415, %v414
        %v427 = vpack.c.b16 %v417, %v416
        %v428 = vpack.c.b16 %v419, %v418
        %v429 = vpack.c.b16 %v420, %v420
        %vm430 = vsmask.f32 7424
        %v432 = vshrl.u32 %v421, 16
        %v434 = vshll.u32 %v421, 16
        %v436 = vrot.slane %v434, 1
        %v437 = vor.u32 %v432, %v436
        %v439 = vshll.u32 %v422, 16
        %v441 = vrot.slane %v439, 1
        %v442 = vsel %vm430, %v437, %v441
        %v443 = vshrl.u32 %v422, 16
        %v445 = vor.u32 %v443, %v441
        %v447 = vshll.u32 %v423, 16
        %v449 = vrot.slane %v447, 1
        %v450 = vsel %vm430, %v445, %v449
        %v451 = vshrl.u32 %v423, 16
        %v453 = vor.u32 %v451, %v449
        %v455 = vshll.u32 %v424, 16
        %v457 = vrot.slane %v455, 1
        %v458 = vsel %vm430, %v453, %v457
        %v459 = vshrl.u32 %v424, 16
        %v461 = vor.u32 %v459, %v457
        %v463 = vshll.u32 %v425, 16
        %v465 = vrot.slane %v463, 1
        %v466 = vsel %vm430, %v461, %v465
        %v467 = vshrl.u32 %v425, 16
        %v469 = vor.u32 %v467, %v465
        %v471 = vshll.u32 %v426, 16
        %v473 = vrot.slane %v471, 1
        %v474 = vsel %vm430, %v469, %v473
        %v475 = vshrl.u32 %v426, 16
        %v477 = vor.u32 %v475, %v473
        %v479 = vshll.u32 %v427, 16
        %v481 = vrot.slane %v479, 1
        %v482 = vsel %vm430, %v477, %v481
        %v483 = vshrl.u32 %v427, 16
        %v485 = vor.u32 %v483, %v481
        %v487 = vshll.u32 %v428, 16
        %v489 = vrot.slane %v487, 1
        %v490 = vsel %vm430, %v485, %v489
        %v491 = vshrl.u32 %v428, 16
        %v493 = vor.u32 %v491, %v489
        %v495 = vshll.u32 %v429, 16
        %v497 = vrot.slane %v495, 1
        %v498 = vsel %vm430, %v493, %v497
        %v503 = vunpack.c.l.b16 %v383
        %v504 = vunpack.c.l.b16 %v384
        %v505 = vunpack.c.l.b16 %v385
        %v506 = vunpack.c.l.b16 %v386
        %v507 = vpack.c.b16 %v504, %v503
        %v508 = vpack.c.b16 %v506, %v505
        %vm511 = vcmask 261120
        %v513 = vsel %vm511, %v442, 0
        %v516 = vsel %vm511, %v450, 0
        %v519 = vsel %vm511, %v458, 0
        %v522 = vsel %vm511, %v466, 0
        %v525 = vsel %vm511, %v474, 0
        %v528 = vsel %vm511, %v482, 0
        %v531 = vsel %vm511, %v490, 0
        %v534 = vsel %vm511, %v498, 0
        %536 = vmatprep.subr.bf16.mxu0 0
        %537 = vmatpush1.bf16.msra.mxu0 %v507
        %538 = vmatprep.subr.bf16.mxu0 0
        %539 = vmatpush1.bf16.msra.mxu0 %v508
        %540 = vmatprep.subr.bf16.mxu0 0
        %541 = vmatpush1.bf16.msra.mxu0 0
        %542 = vmatprep.subr.bf16.mxu0 0
        %543 = vmatpush1.bf16.msra.mxu0 0
        %544 = vmatprep.subr.bf16.mxu0 0
        %545 = vmatpush1.bf16.msra.mxu0 0
        %546 = vmatprep.subr.bf16.mxu0 0
        %547 = vmatpush1.bf16.msra.mxu0 0
        %548 = vmatprep.subr.bf16.mxu0 0
        %549 = vmatpush1.bf16.msra.mxu0 0
        %550 = vmatprep.subr.bf16.mxu0 0
        %551 = vmatpush1.bf16.msra.mxu0 0
        %552 = vmatprep.subr.bf16.mxu0 0
        %553 = vmatpush1.bf16.msra.mxu0 0
        %554 = vmatprep.subr.bf16.mxu0 0
        %555 = vmatpush1.bf16.msra.mxu0 0
        %556 = vmatprep.subr.bf16.mxu0 0
        %557 = vmatpush1.bf16.msra.mxu0 0
        %558 = vmatprep.subr.bf16.mxu0 0
        %559 = vmatpush1.bf16.msra.mxu0 0
        %560 = vmatprep.subr.bf16.mxu0 0
        %561 = vmatpush1.bf16.msra.mxu0 0
        %562 = vmatprep.subr.bf16.mxu0 0
        %563 = vmatpush1.bf16.msra.mxu0 0
        %564 = vmatprep.subr.bf16.mxu0 0
        %565 = vmatpush1.bf16.msra.mxu0 0
        %566 = vmatprep.subr.bf16.mxu0 0
        %567 = vmatpush1.bf16.msra.mxu0 0
        %568 = vmatprep.mubr.bf16.mxu0 0
        %569 = vmatmul.mubr.bf16.gmra.mrb[0].mxu0 %v513
        %v570 = vpop.f32.mrb[0].mxu0
        %v571 = vadd.f32 0.0, %v570
        %v572 = vpop.f32.mrb[0].mxu0
        %v573 = vpop.f32.mrb[0].mxu0
        %v574 = vadd.f32 0.0, %v573
        %v575 = vpop.f32.mrb[0].mxu0
        %576 = vmatprep.mubr.bf16.mxu0 0
        %577 = vmatmul.mubr.bf16.gmra.mrb[0].mxu0 %v516
        %v578 = vpop.f32.mrb[0].mxu0
        %v579 = vadd.f32 0.0, %v578
        %v580 = vpop.f32.mrb[0].mxu0
        %v581 = vpop.f32.mrb[0].mxu0
        %v582 = vadd.f32 0.0, %v581
        %v583 = vpop.f32.mrb[0].mxu0
        %584 = vmatprep.mubr.bf16.mxu0 0
        %585 = vmatmul.mubr.bf16.gmra.mrb[0].mxu0 %v519
        %v586 = vpop.f32.mrb[0].mxu0
        %v587 = vadd.f32 0.0, %v586
        %v588 = vpop.f32.mrb[0].mxu0
        %v589 = vpop.f32.mrb[0].mxu0
        %v590 = vadd.f32 0.0, %v589
        %v591 = vpop.f32.mrb[0].mxu0
        %592 = vmatprep.mubr.bf16.mxu0 0
        %593 = vmatmul.mubr.bf16.gmra.mrb[0].mxu0 %v522
        %v594 = vpop.f32.mrb[0].mxu0
        %v595 = vadd.f32 0.0, %v594
        %v596 = vpop.f32.mrb[0].mxu0
        %v597 = vpop.f32.mrb[0].mxu0
        %v598 = vadd.f32 0.0, %v597
        %v599 = vpop.f32.mrb[0].mxu0
        %600 = vmatprep.mubr.bf16.mxu0 0
        %601 = vmatmul.mubr.bf16.gmra.mrb[0].mxu0 %v525
        %v602 = vpop.f32.mrb[0].mxu0
        %v603 = vadd.f32 0.0, %v602
        %v604 = vpop.f32.mrb[0].mxu0
        %v605 = vpop.f32.mrb[0].mxu0
        %v606 = vadd.f32 0.0, %v605
        %v607 = vpop.f32.mrb[0].mxu0
        %608 = vmatprep.mubr.bf16.mxu0 0
        %609 = vmatmul.mubr.bf16.gmra.mrb[0].mxu0 %v528
        %v610 = vpop.f32.mrb[0].mxu0
        %v611 = vadd.f32 0.0, %v610
        %v612 = vpop.f32.mrb[0].mxu0
        %v613 = vpop.f32.mrb[0].mxu0
        %v614 = vadd.f32 0.0, %v613
        %v615 = vpop.f32.mrb[0].mxu0
        %616 = vmatprep.mubr.bf16.mxu0 0
        %617 = vmatmul.mubr.bf16.gmra.mrb[0].mxu0 %v531
        %v618 = vpop.f32.mrb[0].mxu0
        %v619 = vadd.f32 0.0, %v618
        %v620 = vpop.f32.mrb[0].mxu0
        %v621 = vpop.f32.mrb[0].mxu0
        %v622 = vadd.f32 0.0, %v621
        %v623 = vpop.f32.mrb[0].mxu0
        %624 = vmatprep.mubr.bf16.mxu0 0
        %625 = vmatmul.mubr.bf16.gmra.mrb[0].mxu0 %v534
        %v626 = vpop.f32.mrb[0].mxu0
        %v627 = vadd.f32 0.0, %v626
        %v628 = vpop.f32.mrb[0].mxu0
        %v629 = vpop.f32.mrb[0].mxu0
        %v630 = vadd.f32 0.0, %v629
        %v631 = vpop.f32.mrb[0].mxu0
        %632 = vdwg.mxu0
        %v637 = vunpack.c.l.b16 %v378
        %v638 = vunpack.c.l.b16 %v379
        %v639 = vunpack.c.l.b16 %v380
        %v640 = vunpack.c.l.b16 %v381
        %v641 = vpack.c.b16 %v638, %v637
        %v642 = vpack.c.b16 %v640, %v639
        %v645 = vsel %vm511, %v421, 0
        %v647 = vsel %vm511, %v422, 0
        %v649 = vsel %vm511, %v423, 0
        %v651 = vsel %vm511, %v424, 0
        %v653 = vsel %vm511, %v425, 0
        %v655 = vsel %vm511, %v426, 0
        %v657 = vsel %vm511, %v427, 0
        %v659 = vsel %vm511, %v428, 0
        %661 = vmatprep.subr.bf16.mxu0 0
        %662 = vmatpush1.bf16.msra.mxu0 %v641
        %663 = vmatprep.subr.bf16.mxu0 0
        %664 = vmatpush1.bf16.msra.mxu0 %v642
        %665 = vmatprep.subr.bf16.mxu0 0
        %666 = vmatpush1.bf16.msra.mxu0 0
        %667 = vmatprep.subr.bf16.mxu0 0
        %668 = vmatpush1.bf16.msra.mxu0 0
        %669 = vmatprep.subr.bf16.mxu0 0
        %670 = vmatpush1.bf16.msra.mxu0 0
        %671 = vmatprep.subr.bf16.mxu0 0
        %672 = vmatpush1.bf16.msra.mxu0 0
        %673 = vmatprep.subr.bf16.mxu0 0
        %674 = vmatpush1.bf16.msra.mxu0 0
        %675 = vmatprep.subr.bf16.mxu0 0
        %676 = vmatpush1.bf16.msra.mxu0 0
        %677 = vmatprep.subr.bf16.mxu0 0
        %678 = vmatpush1.bf16.msra.mxu0 0
        %679 = vmatprep.subr.bf16.mxu0 0
        %680 = vmatpush1.bf16.msra.mxu0 0
        %681 = vmatprep.subr.bf16.mxu0 0
        %682 = vmatpush1.bf16.msra.mxu0 0
        %683 = vmatprep.subr.bf16.mxu0 0
        %684 = vmatpush1.bf16.msra.mxu0 0
        %685 = vmatprep.subr.bf16.mxu0 0
        %686 = vmatpush1.bf16.msra.mxu0 0
        %687 = vmatprep.subr.bf16.mxu0 0
        %688 = vmatpush1.bf16.msra.mxu0 0
        %689 = vmatprep.subr.bf16.mxu0 0
        %690 = vmatpush1.bf16.msra.mxu0 0
        %691 = vmatprep.subr.bf16.mxu0 0
        %692 = vmatpush1.bf16.msra.mxu0 0
        %693 = vmatprep.mubr.bf16.mxu0 0
        %694 = vmatmul.mubr.bf16.gmra.mrb[0].mxu0 %v645
        %v695 = vpop.f32.mrb[0].mxu0
        %v696 = vadd.f32 %v571, %v695
        %v697 = vpop.f32.mrb[0].mxu0
        %v698 = vpop.f32.mrb[0].mxu0
        %v699 = vadd.f32 %v574, %v698
        %v700 = vpop.f32.mrb[0].mxu0
        %701 = vmatprep.mubr.bf16.mxu0 0
        %702 = vmatmul.mubr.bf16.gmra.mrb[0].mxu0 %v647
        %v703 = vpop.f32.mrb[0].mxu0
        %v704 = vadd.f32 %v579, %v703
        %v705 = vpop.f32.mrb[0].mxu0
        %v706 = vpop.f32.mrb[0].mxu0
        %v707 = vadd.f32 %v582, %v706
        %v708 = vpop.f32.mrb[0].mxu0
        %709 = vmatprep.mubr.bf16.mxu0 0
        %710 = vmatmul.mubr.bf16.gmra.mrb[0].mxu0 %v649
        %v711 = vpop.f32.mrb[0].mxu0
        %v712 = vadd.f32 %v587, %v711
        %v713 = vpop.f32.mrb[0].mxu0
        %v714 = vpop.f32.mrb[0].mxu0
        %v715 = vadd.f32 %v590, %v714
        %v716 = vpop.f32.mrb[0].mxu0
        %717 = vmatprep.mubr.bf16.mxu0 0
        %718 = vmatmul.mubr.bf16.gmra.mrb[0].mxu0 %v651
        %v719 = vpop.f32.mrb[0].mxu0
        %v720 = vadd.f32 %v595, %v719
        %v721 = vpop.f32.mrb[0].mxu0
        %v722 = vpop.f32.mrb[0].mxu0
        %v723 = vadd.f32 %v598, %v722
        %v724 = vpop.f32.mrb[0].mxu0
        %725 = vmatprep.mubr.bf16.mxu0 0
        %726 = vmatmul.mubr.bf16.gmra.mrb[0].mxu0 %v653
        %v727 = vpop.f32.mrb[0].mxu0
        %v728 = vadd.f32 %v603, %v727
        %v729 = vpop.f32.mrb[0].mxu0
        %v730 = vpop.f32.mrb[0].mxu0
        %v731 = vadd.f32 %v606, %v730
        %v732 = vpop.f32.mrb[0].mxu0
        %733 = vmatprep.mubr.bf16.mxu0 0
        %734 = vmatmul.mubr.bf16.gmra.mrb[0].mxu0 %v655
        %v735 = vpop.f32.mrb[0].mxu0
        %v736 = vadd.f32 %v611, %v735
        %v737 = vpop.f32.mrb[0].mxu0
        %v738 = vpop.f32.mrb[0].mxu0
        %v739 = vadd.f32 %v614, %v738
        %v740 = vpop.f32.mrb[0].mxu0
        %741 = vmatprep.mubr.bf16.mxu0 0
        %742 = vmatmul.mubr.bf16.gmra.mrb[0].mxu0 %v657
        %v743 = vpop.f32.mrb[0].mxu0
        %v744 = vadd.f32 %v619, %v743
        %v745 = vpop.f32.mrb[0].mxu0
        %v746 = vpop.f32.mrb[0].mxu0
        %v747 = vadd.f32 %v622, %v746
        %v748 = vpop.f32.mrb[0].mxu0
        %749 = vmatprep.mubr.bf16.mxu0 0
        %750 = vmatmul.mubr.bf16.gmra.mrb[0].mxu0 %v659
        %v751 = vpop.f32.mrb[0].mxu0
        %v752 = vadd.f32 %v627, %v751
        %v753 = vpop.f32.mrb[0].mxu0
        %v754 = vpop.f32.mrb[0].mxu0
        %v755 = vadd.f32 %v630, %v754
        %v756 = vpop.f32.mrb[0].mxu0
        %757 = vdwg.mxu0
        %s758 = scalar_lea.vmem %s1, 32
        %v759 = vld [vmem:[%s758] sm:$0xf]
        %v760 = vld [vmem:[%s758 + $0x4] sm:$0xf]
        %v761 = vld [vmem:[%s758 + $0x8] sm:$0xf]
        %v762 = vld [vmem:[%s758 + $0xc] sm:$0xf]
        %vm763 = vcmask 1046528
        %v764 = vrot.slane %v421, 1
        %v765 = vrot.slane %v422, 1
        %v766 = vsel %vm763, %v764, %v765
        %v767 = vrot.slane %v423, 1
        %v768 = vsel %vm763, %v765, %v767
        %v769 = vrot.slane %v424, 1
        %v770 = vsel %vm763, %v767, %v769
        %v771 = vrot.slane %v425, 1
        %v772 = vsel %vm763, %v769, %v771
        %v773 = vrot.slane %v426, 1
        %v774 = vsel %vm763, %v771, %v773
        %v775 = vrot.slane %v427, 1
        %v776 = vsel %vm763, %v773, %v775
        %v777 = vrot.slane %v428, 1
        %v778 = vsel %vm763, %v775, %v777
        %v779 = vrot.slane %v429, 1
        %v780 = vsel %vm763, %v777, %v779
        %v785 = vunpack.c.l.b16 %v759
        %v786 = vunpack.c.l.b16 %v760
        %v787 = vunpack.c.l.b16 %v761
        %v788 = vunpack.c.l.b16 %v762
        %v789 = vpack.c.b16 %v786, %v785
        %v790 = vpack.c.b16 %v788, %v787
        %v794 = vsel %vm511, %v766, 0
        %v797 = vsel %vm511, %v768, 0
        %v800 = vsel %vm511, %v770, 0
        %v803 = vsel %vm511, %v772, 0
        %v806 = vsel %vm511, %v774, 0
        %v809 = vsel %vm511, %v776, 0
        %v812 = vsel %vm511, %v778, 0
        %v815 = vsel %vm511, %v780, 0
        %817 = vmatprep.subr.bf16.mxu0 0
        %818 = vmatpush1.bf16.msra.mxu0 %v789
        %819 = vmatprep.subr.bf16.mxu0 0
        %820 = vmatpush1.bf16.msra.mxu0 %v790
        %821 = vmatprep.subr.bf16.mxu0 0
        %822 = vmatpush1.bf16.msra.mxu0 0
        %823 = vmatprep.subr.bf16.mxu0 0
        %824 = vmatpush1.bf16.msra.mxu0 0
        %825 = vmatprep.subr.bf16.mxu0 0
        %826 = vmatpush1.bf16.msra.mxu0 0
        %827 = vmatprep.subr.bf16.mxu0 0
        %828 = vmatpush1.bf16.msra.mxu0 0
        %829 = vmatprep.subr.bf16.mxu0 0
        %830 = vmatpush1.bf16.msra.mxu0 0
        %831 = vmatprep.subr.bf16.mxu0 0
        %832 = vmatpush1.bf16.msra.mxu0 0
        %833 = vmatprep.subr.bf16.mxu0 0
        %834 = vmatpush1.bf16.msra.mxu0 0
        %835 = vmatprep.subr.bf16.mxu0 0
        %836 = vmatpush1.bf16.msra.mxu0 0
        %837 = vmatprep.subr.bf16.mxu0 0
        %838 = vmatpush1.bf16.msra.mxu0 0
        %839 = vmatprep.subr.bf16.mxu0 0
        %840 = vmatpush1.bf16.msra.mxu0 0
        %841 = vmatprep.subr.bf16.mxu0 0
        %842 = vmatpush1.bf16.msra.mxu0 0
        %843 = vmatprep.subr.bf16.mxu0 0
        %844 = vmatpush1.bf16.msra.mxu0 0
        %845 = vmatprep.subr.bf16.mxu0 0
        %846 = vmatpush1.bf16.msra.mxu0 0
        %847 = vmatprep.subr.bf16.mxu0 0
        %848 = vmatpush1.bf16.msra.mxu0 0
        %849 = vmatprep.mubr.bf16.mxu0 0
        %850 = vmatmul.mubr.bf16.gmra.mrb[0].mxu0 %v794
        %v851 = vpop.f32.mrb[0].mxu0
        %v852 = vadd.f32 0.0, %v851
        %v853 = vpop.f32.mrb[0].mxu0
        %v854 = vpop.f32.mrb[0].mxu0
        %v855 = vadd.f32 0.0, %v854
        %v856 = vpop.f32.mrb[0].mxu0
        %857 = vmatprep.mubr.bf16.mxu0 0
        %858 = vmatmul.mubr.bf16.gmra.mrb[0].mxu0 %v797
        %v859 = vpop.f32.mrb[0].mxu0
        %v860 = vadd.f32 0.0, %v859
        %v861 = vpop.f32.mrb[0].mxu0
        %v862 = vpop.f32.mrb[0].mxu0
        %v863 = vadd.f32 0.0, %v862
        %v864 = vpop.f32.mrb[0].mxu0
        %865 = vmatprep.mubr.bf16.mxu0 0
        %866 = vmatmul.mubr.bf16.gmra.mrb[0].mxu0 %v800
        %v867 = vpop.f32.mrb[0].mxu0
        %v868 = vadd.f32 0.0, %v867
        %v869 = vpop.f32.mrb[0].mxu0
        %v870 = vpop.f32.mrb[0].mxu0
        %v871 = vadd.f32 0.0, %v870
        %v872 = vpop.f32.mrb[0].mxu0
        %873 = vmatprep.mubr.bf16.mxu0 0
        %874 = vmatmul.mubr.bf16.gmra.mrb[0].mxu0 %v803
        %v875 = vpop.f32.mrb[0].mxu0
        %v876 = vadd.f32 0.0, %v875
        %v877 = vpop.f32.mrb[0].mxu0
        %v878 = vpop.f32.mrb[0].mxu0
        %v879 = vadd.f32 0.0, %v878
        %v880 = vpop.f32.mrb[0].mxu0
        %881 = vmatprep.mubr.bf16.mxu0 0
        %882 = vmatmul.mubr.bf16.gmra.mrb[0].mxu0 %v806
        %v883 = vpop.f32.mrb[0].mxu0
        %v884 = vadd.f32 0.0, %v883
        %v885 = vpop.f32.mrb[0].mxu0
        %v886 = vpop.f32.mrb[0].mxu0
        %v887 = vadd.f32 0.0, %v886
        %v888 = vpop.f32.mrb[0].mxu0
        %889 = vmatprep.mubr.bf16.mxu0 0
        %890 = vmatmul.mubr.bf16.gmra.mrb[0].mxu0 %v809
        %v891 = vpop.f32.mrb[0].mxu0
        %v892 = vadd.f32 0.0, %v891
        %v893 = vpop.f32.mrb[0].mxu0
        %v894 = vpop.f32.mrb[0].mxu0
        %v895 = vadd.f32 0.0, %v894
        %v896 = vpop.f32.mrb[0].mxu0
        %897 = vmatprep.mubr.bf16.mxu0 0
        %898 = vmatmul.mubr.bf16.gmra.mrb[0].mxu0 %v812
        %v899 = vpop.f32.mrb[0].mxu0
        %v900 = vadd.f32 0.0, %v899
        %v901 = vpop.f32.mrb[0].mxu0
        %v902 = vpop.f32.mrb[0].mxu0
        %v903 = vadd.f32 0.0, %v902
        %v904 = vpop.f32.mrb[0].mxu0
        %905 = vmatprep.mubr.bf16.mxu0 0
        %906 = vmatmul.mubr.bf16.gmra.mrb[0].mxu0 %v815
        %v907 = vpop.f32.mrb[0].mxu0
        %v908 = vadd.f32 0.0, %v907
        %v909 = vpop.f32.mrb[0].mxu0
        %v910 = vpop.f32.mrb[0].mxu0
        %v911 = vadd.f32 0.0, %v910
        %v912 = vpop.f32.mrb[0].mxu0
        %913 = vdwg.mxu0
        %v914 = vadd.f32 %v696, %v852
        %v915 = vadd.f32 %v699, %v855
        %v916 = vadd.f32 %v704, %v860
        %v917 = vadd.f32 %v707, %v863
        %v918 = vadd.f32 %v712, %v868
        %v919 = vadd.f32 %v715, %v871
        %v920 = vadd.f32 %v720, %v876
        %v921 = vadd.f32 %v723, %v879
        %v922 = vadd.f32 %v728, %v884
        %v923 = vadd.f32 %v731, %v887
        %v924 = vadd.f32 %v736, %v892
        %v925 = vadd.f32 %v739, %v895
        %v926 = vadd.f32 %v744, %v900
        %v927 = vadd.f32 %v747, %v903
        %v928 = vadd.f32 %v752, %v908
        %v929 = vadd.f32 %v755, %v911
        %v931 = vlaneseq
        %v932 = vshrl.u32 %v931, 7
        %v933 = vsub.s32 0, %v932
        %v934 = vrot.slane %v376, %v933
        %v936 = vmul.f32 %v914, %v934
        %v937 = vmul.f32 %v915, %v934
        %v938 = vmul.f32 %v916, %v934
        %v939 = vmul.f32 %v917, %v934
        %v940 = vmul.f32 %v918, %v934
        %v941 = vmul.f32 %v919, %v934
        %v942 = vmul.f32 %v920, %v934
        %v943 = vmul.f32 %v921, %v934
        %v944 = vmul.f32 %v922, %v934
        %v945 = vmul.f32 %v923, %v934
        %v946 = vmul.f32 %v924, %v934
        %v947 = vmul.f32 %v925, %v934
        %v948 = vmul.f32 %v926, %v934
        %v949 = vmul.f32 %v927, %v934
        %v950 = vmul.f32 %v928, %v934
        %v951 = vmul.f32 %v929, %v934
        %v953 = vlaneseq
        %v954 = vshrl.u32 %v953, 7
        %v955 = vsub.s32 0, %v954
        %v956 = vrot.slane %v377, %v955
        %v958 = vadd.f32 %v936, %v956
        %v959 = vadd.f32 %v937, %v956
        %v960 = vadd.f32 %v938, %v956
        %v961 = vadd.f32 %v939, %v956
        %v962 = vadd.f32 %v940, %v956
        %v963 = vadd.f32 %v941, %v956
        %v964 = vadd.f32 %v942, %v956
        %v965 = vadd.f32 %v943, %v956
        %v966 = vadd.f32 %v944, %v956
        %v967 = vadd.f32 %v945, %v956
        %v968 = vadd.f32 %v946, %v956
        %v969 = vadd.f32 %v947, %v956
        %v970 = vadd.f32 %v948, %v956
        %v971 = vadd.f32 %v949, %v956
        %v972 = vadd.f32 %v950, %v956
        %v973 = vadd.f32 %v951, %v956
        %v974 = vxor.u32 %v958, 2147483648
        %v975 = vxor.u32 %v959, 2147483648
        %v976 = vxor.u32 %v960, 2147483648
        %v977 = vxor.u32 %v961, 2147483648
        %v978 = vxor.u32 %v962, 2147483648
        %v979 = vxor.u32 %v963, 2147483648
        %v980 = vxor.u32 %v964, 2147483648
        %v981 = vxor.u32 %v965, 2147483648
        %v982 = vxor.u32 %v966, 2147483648
        %v983 = vxor.u32 %v967, 2147483648
        %v984 = vxor.u32 %v968, 2147483648
        %v985 = vxor.u32 %v969, 2147483648
        %v986 = vxor.u32 %v970, 2147483648
        %v987 = vxor.u32 %v971, 2147483648
        %v988 = vxor.u32 %v972, 2147483648
        %v989 = vxor.u32 %v973, 2147483648
        %v990 = vmul.f32 %v974, 1.442695
        %v991 = vpow.pop %v990
        %v992 = vmul.f32 %v975, 1.442695
        %v993 = vpow.pop %v992
        %v994 = vmul.f32 %v976, 1.442695
        %v995 = vpow.pop %v994
        %v996 = vmul.f32 %v977, 1.442695
        %v997 = vpow.pop %v996
        %v998 = vmul.f32 %v978, 1.442695
        %v999 = vpow.pop %v998
        %v1000 = vmul.f32 %v979, 1.442695
        %v1001 = vpow.pop %v1000
        %v1002 = vmul.f32 %v980, 1.442695
        %v1003 = vpow.pop %v1002
        %v1004 = vmul.f32 %v981, 1.442695
        %v1005 = vpow.pop %v1004
        %v1006 = vmul.f32 %v982, 1.442695
        %v1007 = vpow.pop %v1006
        %v1008 = vmul.f32 %v983, 1.442695
        %v1009 = vpow.pop %v1008
        %v1010 = vmul.f32 %v984, 1.442695
        %v1011 = vpow.pop %v1010
        %v1012 = vmul.f32 %v985, 1.442695
        %v1013 = vpow.pop %v1012
        %v1014 = vmul.f32 %v986, 1.442695
        %v1015 = vpow.pop %v1014
        %v1016 = vmul.f32 %v987, 1.442695
        %v1017 = vpow.pop %v1016
        %v1018 = vmul.f32 %v988, 1.442695
        %v1019 = vpow.pop %v1018
        %v1020 = vmul.f32 %v989, 1.442695
        %v1021 = vpow.pop %v1020
        %v1022 = vadd.f32 %v991, 1.0
        %v1023 = vadd.f32 %v993, 1.0
        %v1024 = vadd.f32 %v995, 1.0
        %v1025 = vadd.f32 %v997, 1.0
        %v1026 = vadd.f32 %v999, 1.0
        %v1027 = vadd.f32 %v1001, 1.0
        %v1028 = vadd.f32 %v1003, 1.0
        %v1029 = vadd.f32 %v1005, 1.0
        %v1030 = vadd.f32 %v1007, 1.0
        %v1031 = vadd.f32 %v1009, 1.0
        %v1032 = vadd.f32 %v1011, 1.0
        %v1033 = vadd.f32 %v1013, 1.0
        %v1034 = vadd.f32 %v1015, 1.0
        %v1035 = vadd.f32 %v1017, 1.0
        %v1036 = vadd.f32 %v1019, 1.0
        %v1037 = vadd.f32 %v1021, 1.0
        %v1038 = vrcp.pop %v1022
        %v1039 = vmul.f32 1.0, %v1038
        %v1040 = vrcp.pop %v1023
        %v1041 = vmul.f32 1.0, %v1040
        %v1042 = vrcp.pop %v1024
        %v1043 = vmul.f32 1.0, %v1042
        %v1044 = vrcp.pop %v1025
        %v1045 = vmul.f32 1.0, %v1044
        %v1046 = vrcp.pop %v1026
        %v1047 = vmul.f32 1.0, %v1046
        %v1048 = vrcp.pop %v1027
        %v1049 = vmul.f32 1.0, %v1048
        %v1050 = vrcp.pop %v1028
        %v1051 = vmul.f32 1.0, %v1050
        %v1052 = vrcp.pop %v1029
        %v1053 = vmul.f32 1.0, %v1052
        %v1054 = vrcp.pop %v1030
        %v1055 = vmul.f32 1.0, %v1054
        %v1056 = vrcp.pop %v1031
        %v1057 = vmul.f32 1.0, %v1056
        %v1058 = vrcp.pop %v1032
        %v1059 = vmul.f32 1.0, %v1058
        %v1060 = vrcp.pop %v1033
        %v1061 = vmul.f32 1.0, %v1060
        %v1062 = vrcp.pop %v1034
        %v1063 = vmul.f32 1.0, %v1062
        %v1064 = vrcp.pop %v1035
        %v1065 = vmul.f32 1.0, %v1064
        %v1066 = vrcp.pop %v1036
        %v1067 = vmul.f32 1.0, %v1066
        %v1068 = vrcp.pop %v1037
        %v1069 = vmul.f32 1.0, %v1068
        %v1070 = vmul.f32 %v958, %v1039
        %v1071 = vmul.f32 %v959, %v1041
        %v1072 = vmul.f32 %v960, %v1043
        %v1073 = vmul.f32 %v961, %v1045
        %v1074 = vmul.f32 %v962, %v1047
        %v1075 = vmul.f32 %v963, %v1049
        %v1076 = vmul.f32 %v964, %v1051
        %v1077 = vmul.f32 %v965, %v1053
        %v1078 = vmul.f32 %v966, %v1055
        %v1079 = vmul.f32 %v967, %v1057
        %v1080 = vmul.f32 %v968, %v1059
        %v1081 = vmul.f32 %v969, %v1061
        %v1082 = vmul.f32 %v970, %v1063
        %v1083 = vmul.f32 %v971, %v1065
        %v1084 = vmul.f32 %v972, %v1067
        %v1085 = vmul.f32 %v973, %v1069
        %vm1086 = vcmask 64512
        %v1087 = vsel %vm1086, %v1070, 0.0
        %1088 = vadd.xlane.f32.xlu0 %v1087
        %v1089 = vpop.xlane.xlu0 %1088
        %v1090 = vsel %vm1086, %v1071, 0.0
        %1091 = vadd.xlane.f32.xlu0 %v1090
        %v1092 = vpop.xlane.xlu0 %1091
        %v1093 = vsel %vm1086, %v1072, 0.0
        %1094 = vadd.xlane.f32.xlu0 %v1093
        %v1095 = vpop.xlane.xlu0 %1094
        %v1096 = vsel %vm1086, %v1073, 0.0
        %1097 = vadd.xlane.f32.xlu0 %v1096
        %v1098 = vpop.xlane.xlu0 %1097
        %v1099 = vsel %vm1086, %v1074, 0.0
        %1100 = vadd.xlane.f32.xlu0 %v1099
        %v1101 = vpop.xlane.xlu0 %1100
        %v1102 = vsel %vm1086, %v1075, 0.0
        %1103 = vadd.xlane.f32.xlu0 %v1102
        %v1104 = vpop.xlane.xlu0 %1103
        %v1105 = vsel %vm1086, %v1076, 0.0
        %1106 = vadd.xlane.f32.xlu0 %v1105
        %v1107 = vpop.xlane.xlu0 %1106
        %v1108 = vsel %vm1086, %v1077, 0.0
        %1109 = vadd.xlane.f32.xlu0 %v1108
        %v1110 = vpop.xlane.xlu0 %1109
        %v1111 = vsel %vm1086, %v1078, 0.0
        %1112 = vadd.xlane.f32.xlu0 %v1111
        %v1113 = vpop.xlane.xlu0 %1112
        %v1114 = vsel %vm1086, %v1079, 0.0
        %1115 = vadd.xlane.f32.xlu0 %v1114
        %v1116 = vpop.xlane.xlu0 %1115
        %v1117 = vsel %vm1086, %v1080, 0.0
        %1118 = vadd.xlane.f32.xlu0 %v1117
        %v1119 = vpop.xlane.xlu0 %1118
        %v1120 = vsel %vm1086, %v1081, 0.0
        %1121 = vadd.xlane.f32.xlu0 %v1120
        %v1122 = vpop.xlane.xlu0 %1121
        %v1123 = vsel %vm1086, %v1082, 0.0
        %1124 = vadd.xlane.f32.xlu0 %v1123
        %v1125 = vpop.xlane.xlu0 %1124
        %v1126 = vsel %vm1086, %v1083, 0.0
        %1127 = vadd.xlane.f32.xlu0 %v1126
        %v1128 = vpop.xlane.xlu0 %1127
        %v1129 = vsel %vm1086, %v1084, 0.0
        %1130 = vadd.xlane.f32.xlu0 %v1129
        %v1131 = vpop.xlane.xlu0 %1130
        %v1132 = vsel %vm1086, %v1085, 0.0
        %1133 = vadd.xlane.f32.xlu0 %v1132
        %v1134 = vpop.xlane.xlu0 %1133
        %v1135 = vrcp.pop 8.0
        %v1136 = vmul.f32 %v1089, %v1135
        %v1137 = vmul.f32 %v1092, %v1135
        %v1138 = vmul.f32 %v1095, %v1135
        %v1139 = vmul.f32 %v1098, %v1135
        %v1140 = vmul.f32 %v1101, %v1135
        %v1141 = vmul.f32 %v1104, %v1135
        %v1142 = vmul.f32 %v1107, %v1135
        %v1143 = vmul.f32 %v1110, %v1135
        %v1144 = vmul.f32 %v1113, %v1135
        %v1145 = vmul.f32 %v1116, %v1135
        %v1146 = vmul.f32 %v1119, %v1135
        %v1147 = vmul.f32 %v1122, %v1135
        %v1148 = vmul.f32 %v1125, %v1135
        %v1149 = vmul.f32 %v1128, %v1135
        %v1150 = vmul.f32 %v1131, %v1135
        %v1151 = vmul.f32 %v1134, %v1135
        %v1152 = vsub.f32 %v1070, %v1136
        %v1153 = vsub.f32 %v1071, %v1137
        %v1154 = vsub.f32 %v1072, %v1138
        %v1155 = vsub.f32 %v1073, %v1139
        %v1156 = vsub.f32 %v1074, %v1140
        %v1157 = vsub.f32 %v1075, %v1141
        %v1158 = vsub.f32 %v1076, %v1142
        %v1159 = vsub.f32 %v1077, %v1143
        %v1160 = vsub.f32 %v1078, %v1144
        %v1161 = vsub.f32 %v1079, %v1145
        %v1162 = vsub.f32 %v1080, %v1146
        %v1163 = vsub.f32 %v1081, %v1147
        %v1164 = vsub.f32 %v1082, %v1148
        %v1165 = vsub.f32 %v1083, %v1149
        %v1166 = vsub.f32 %v1084, %v1150
        %v1167 = vsub.f32 %v1085, %v1151
        %v1168 = vmul.f32 %v1152, %v1152
        %v1169 = vmul.f32 %v1153, %v1153
        %v1170 = vmul.f32 %v1154, %v1154
        %v1171 = vmul.f32 %v1155, %v1155
        %v1172 = vmul.f32 %v1156, %v1156
        %v1173 = vmul.f32 %v1157, %v1157
        %v1174 = vmul.f32 %v1158, %v1158
        %v1175 = vmul.f32 %v1159, %v1159
        %v1176 = vmul.f32 %v1160, %v1160
        %v1177 = vmul.f32 %v1161, %v1161
        %v1178 = vmul.f32 %v1162, %v1162
        %v1179 = vmul.f32 %v1163, %v1163
        %v1180 = vmul.f32 %v1164, %v1164
        %v1181 = vmul.f32 %v1165, %v1165
        %v1182 = vmul.f32 %v1166, %v1166
        %v1183 = vmul.f32 %v1167, %v1167
        %v1184 = vsel %vm1086, %v1168, 0.0
        %1185 = vadd.xlane.f32.xlu0 %v1184
        %v1186 = vpop.xlane.xlu0 %1185
        %v1187 = vsel %vm1086, %v1169, 0.0
        %1188 = vadd.xlane.f32.xlu0 %v1187
        %v1189 = vpop.xlane.xlu0 %1188
        %v1190 = vsel %vm1086, %v1170, 0.0
        %1191 = vadd.xlane.f32.xlu0 %v1190
        %v1192 = vpop.xlane.xlu0 %1191
        %v1193 = vsel %vm1086, %v1171, 0.0
        %1194 = vadd.xlane.f32.xlu0 %v1193
        %v1195 = vpop.xlane.xlu0 %1194
        %v1196 = vsel %vm1086, %v1172, 0.0
        %1197 = vadd.xlane.f32.xlu0 %v1196
        %v1198 = vpop.xlane.xlu0 %1197
        %v1199 = vsel %vm1086, %v1173, 0.0
        %1200 = vadd.xlane.f32.xlu0 %v1199
        %v1201 = vpop.xlane.xlu0 %1200
        %v1202 = vsel %vm1086, %v1174, 0.0
        %1203 = vadd.xlane.f32.xlu0 %v1202
        %v1204 = vpop.xlane.xlu0 %1203
        %v1205 = vsel %vm1086, %v1175, 0.0
        %1206 = vadd.xlane.f32.xlu0 %v1205
        %v1207 = vpop.xlane.xlu0 %1206
        %v1208 = vsel %vm1086, %v1176, 0.0
        %1209 = vadd.xlane.f32.xlu0 %v1208
        %v1210 = vpop.xlane.xlu0 %1209
        %v1211 = vsel %vm1086, %v1177, 0.0
        %1212 = vadd.xlane.f32.xlu0 %v1211
        %v1213 = vpop.xlane.xlu0 %1212
        %v1214 = vsel %vm1086, %v1178, 0.0
        %1215 = vadd.xlane.f32.xlu0 %v1214
        %v1216 = vpop.xlane.xlu0 %1215
        %v1217 = vsel %vm1086, %v1179, 0.0
        %1218 = vadd.xlane.f32.xlu0 %v1217
        %v1219 = vpop.xlane.xlu0 %1218
        %v1220 = vsel %vm1086, %v1180, 0.0
        %1221 = vadd.xlane.f32.xlu0 %v1220
        %v1222 = vpop.xlane.xlu0 %1221
        %v1223 = vsel %vm1086, %v1181, 0.0
        %1224 = vadd.xlane.f32.xlu0 %v1223
        %v1225 = vpop.xlane.xlu0 %1224
        %v1226 = vsel %vm1086, %v1182, 0.0
        %1227 = vadd.xlane.f32.xlu0 %v1226
        %v1228 = vpop.xlane.xlu0 %1227
        %v1229 = vsel %vm1086, %v1183, 0.0
        %1230 = vadd.xlane.f32.xlu0 %v1229
        %v1231 = vpop.xlane.xlu0 %1230
        %v1232 = vmul.f32 %v1186, %v1135
        %v1233 = vmul.f32 %v1189, %v1135
        %v1234 = vmul.f32 %v1192, %v1135
        %v1235 = vmul.f32 %v1195, %v1135
        %v1236 = vmul.f32 %v1198, %v1135
        %v1237 = vmul.f32 %v1201, %v1135
        %v1238 = vmul.f32 %v1204, %v1135
        %v1239 = vmul.f32 %v1207, %v1135
        %v1240 = vmul.f32 %v1210, %v1135
        %v1241 = vmul.f32 %v1213, %v1135
        %v1242 = vmul.f32 %v1216, %v1135
        %v1243 = vmul.f32 %v1219, %v1135
        %v1244 = vmul.f32 %v1222, %v1135
        %v1245 = vmul.f32 %v1225, %v1135
        %v1246 = vmul.f32 %v1228, %v1135
        %v1247 = vmul.f32 %v1231, %v1135
        %v1248 = vadd.f32 %v1232, 1e-05
        %v1249 = vadd.f32 %v1233, 1e-05
        %v1250 = vadd.f32 %v1234, 1e-05
        %v1251 = vadd.f32 %v1235, 1e-05
        %v1252 = vadd.f32 %v1236, 1e-05
        %v1253 = vadd.f32 %v1237, 1e-05
        %v1254 = vadd.f32 %v1238, 1e-05
        %v1255 = vadd.f32 %v1239, 1e-05
        %v1256 = vadd.f32 %v1240, 1e-05
        %v1257 = vadd.f32 %v1241, 1e-05
        %v1258 = vadd.f32 %v1242, 1e-05
        %v1259 = vadd.f32 %v1243, 1e-05
        %v1260 = vadd.f32 %v1244, 1e-05
        %v1261 = vadd.f32 %v1245, 1e-05
        %v1262 = vadd.f32 %v1246, 1e-05
        %v1263 = vadd.f32 %v1247, 1e-05
        %v1264 = vrsqrt.pop %v1248
        %v1265 = vrsqrt.pop %v1249
        %v1266 = vrsqrt.pop %v1250
        %v1267 = vrsqrt.pop %v1251
        %v1268 = vrsqrt.pop %v1252
        %v1269 = vrsqrt.pop %v1253
        %v1270 = vrsqrt.pop %v1254
        %v1271 = vrsqrt.pop %v1255
        %v1272 = vrsqrt.pop %v1256
        %v1273 = vrsqrt.pop %v1257
        %v1274 = vrsqrt.pop %v1258
        %v1275 = vrsqrt.pop %v1259
        %v1276 = vrsqrt.pop %v1260
        %v1277 = vrsqrt.pop %v1261
        %v1278 = vrsqrt.pop %v1262
        %v1279 = vrsqrt.pop %v1263
        %v1280 = vmul.f32 %v1152, %v1264
        %v1281 = vmul.f32 %v1153, %v1265
        %v1282 = vmul.f32 %v1154, %v1266
        %v1283 = vmul.f32 %v1155, %v1267
        %v1284 = vmul.f32 %v1156, %v1268
        %v1285 = vmul.f32 %v1157, %v1269
        %v1286 = vmul.f32 %v1158, %v1270
        %v1287 = vmul.f32 %v1159, %v1271
        %v1288 = vmul.f32 %v1160, %v1272
        %v1289 = vmul.f32 %v1161, %v1273
        %v1290 = vmul.f32 %v1162, %v1274
        %v1291 = vmul.f32 %v1163, %v1275
        %v1292 = vmul.f32 %v1164, %v1276
        %v1293 = vmul.f32 %v1165, %v1277
        %v1294 = vmul.f32 %v1166, %v1278
        %v1295 = vmul.f32 %v1167, %v1279
        %v1296 = vpack.c.bf16 %v1281, %v1280
        %v1297 = vpack.c.bf16 %v1283, %v1282
        %v1298 = vpack.c.bf16 %v1285, %v1284
        %v1299 = vpack.c.bf16 %v1287, %v1286
        %v1300 = vpack.c.bf16 %v1289, %v1288
        %v1301 = vpack.c.bf16 %v1291, %v1290
        %v1302 = vpack.c.bf16 %v1293, %v1292
        %v1303 = vpack.c.bf16 %v1295, %v1294
        %v1304 = vld [vmem:[%s7] sm:$0xf]
        %v1306 = vsel %vm1086, %v1296, 0
        %v1309 = vsel %vm1086, %v1297, 0
        %v1312 = vsel %vm1086, %v1298, 0
        %v1315 = vsel %vm1086, %v1299, 0
        %v1318 = vsel %vm1086, %v1300, 0
        %v1321 = vsel %vm1086, %v1301, 0
        %v1324 = vsel %vm1086, %v1302, 0
        %v1327 = vsel %vm1086, %v1303, 0
        %vm1329 = vcmask 1043456
        %v1331 = vsel %vm1329, %v1304, 0
        %1333 = vmatprep.subr.bf16.mxu0 0
        %1334 = vmatpush1.bf16.msra.mxu0 %v1331
        %1335 = vmatprep.subr.bf16.mxu0 0
        %1336 = vmatpush1.bf16.msra.mxu0 0
        %1337 = vmatprep.subr.bf16.mxu0 0
        %1338 = vmatpush1.bf16.msra.mxu0 0
        %1339 = vmatprep.subr.bf16.mxu0 0
        %1340 = vmatpush1.bf16.msra.mxu0 0
        %1341 = vmatprep.subr.bf16.mxu0 0
        %1342 = vmatpush1.bf16.msra.mxu0 0
        %1343 = vmatprep.subr.bf16.mxu0 0
        %1344 = vmatpush1.bf16.msra.mxu0 0
        %1345 = vmatprep.subr.bf16.mxu0 0
        %1346 = vmatpush1.bf16.msra.mxu0 0
        %1347 = vmatprep.subr.bf16.mxu0 0
        %1348 = vmatpush1.bf16.msra.mxu0 0
        %1349 = vmatprep.subr.bf16.mxu0 0
        %1350 = vmatpush1.bf16.msra.mxu0 0
        %1351 = vmatprep.subr.bf16.mxu0 0
        %1352 = vmatpush1.bf16.msra.mxu0 0
        %1353 = vmatprep.subr.bf16.mxu0 0
        %1354 = vmatpush1.bf16.msra.mxu0 0
        %1355 = vmatprep.subr.bf16.mxu0 0
        %1356 = vmatpush1.bf16.msra.mxu0 0
        %1357 = vmatprep.subr.bf16.mxu0 0
        %1358 = vmatpush1.bf16.msra.mxu0 0
        %1359 = vmatprep.subr.bf16.mxu0 0
        %1360 = vmatpush1.bf16.msra.mxu0 0
        %1361 = vmatprep.subr.bf16.mxu0 0
        %1362 = vmatpush1.bf16.msra.mxu0 0
        %1363 = vmatprep.subr.bf16.mxu0 0
        %1364 = vmatpush1.bf16.msra.mxu0 0
        %1365 = vmatprep.mubr.bf16.mxu0 0
        %1366 = vmatmul.mubr.bf16.gmra.mrb[0].mxu0 %v1306
        %v1367 = vpop.f32.mrb[0].mxu0
        %v1368 = vadd.f32 0.0, %v1367
        %v1369 = vpop.f32.mrb[0].mxu0
        %v1370 = vpop.f32.mrb[0].mxu0
        %v1371 = vadd.f32 0.0, %v1370
        %v1372 = vpop.f32.mrb[0].mxu0
        %1373 = vmatprep.mubr.bf16.mxu0 0
        %1374 = vmatmul.mubr.bf16.gmra.mrb[0].mxu0 %v1309
        %v1375 = vpop.f32.mrb[0].mxu0
        %v1376 = vadd.f32 0.0, %v1375
        %v1377 = vpop.f32.mrb[0].mxu0
        %v1378 = vpop.f32.mrb[0].mxu0
        %v1379 = vadd.f32 0.0, %v1378
        %v1380 = vpop.f32.mrb[0].mxu0
        %1381 = vmatprep.mubr.bf16.mxu0 0
        %1382 = vmatmul.mubr.bf16.gmra.mrb[0].mxu0 %v1312
        %v1383 = vpop.f32.mrb[0].mxu0
        %v1384 = vadd.f32 0.0, %v1383
        %v1385 = vpop.f32.mrb[0].mxu0
        %v1386 = vpop.f32.mrb[0].mxu0
        %v1387 = vadd.f32 0.0, %v1386
        %v1388 = vpop.f32.mrb[0].mxu0
        %1389 = vmatprep.mubr.bf16.mxu0 0
        %1390 = vmatmul.mubr.bf16.gmra.mrb[0].mxu0 %v1315
        %v1391 = vpop.f32.mrb[0].mxu0
        %v1392 = vadd.f32 0.0, %v1391
        %v1393 = vpop.f32.mrb[0].mxu0
        %v1394 = vpop.f32.mrb[0].mxu0
        %v1395 = vadd.f32 0.0, %v1394
        %v1396 = vpop.f32.mrb[0].mxu0
        %1397 = vmatprep.mubr.bf16.mxu0 0
        %1398 = vmatmul.mubr.bf16.gmra.mrb[0].mxu0 %v1318
        %v1399 = vpop.f32.mrb[0].mxu0
        %v1400 = vadd.f32 0.0, %v1399
        %v1401 = vpop.f32.mrb[0].mxu0
        %v1402 = vpop.f32.mrb[0].mxu0
        %v1403 = vadd.f32 0.0, %v1402
        %v1404 = vpop.f32.mrb[0].mxu0
        %1405 = vmatprep.mubr.bf16.mxu0 0
        %1406 = vmatmul.mubr.bf16.gmra.mrb[0].mxu0 %v1321
        %v1407 = vpop.f32.mrb[0].mxu0
        %v1408 = vadd.f32 0.0, %v1407
        %v1409 = vpop.f32.mrb[0].mxu0
        %v1410 = vpop.f32.mrb[0].mxu0
        %v1411 = vadd.f32 0.0, %v1410
        %v1412 = vpop.f32.mrb[0].mxu0
        %1413 = vmatprep.mubr.bf16.mxu0 0
        %1414 = vmatmul.mubr.bf16.gmra.mrb[0].mxu0 %v1324
        %v1415 = vpop.f32.mrb[0].mxu0
        %v1416 = vadd.f32 0.0, %v1415
        %v1417 = vpop.f32.mrb[0].mxu0
        %v1418 = vpop.f32.mrb[0].mxu0
        %v1419 = vadd.f32 0.0, %v1418
        %v1420 = vpop.f32.mrb[0].mxu0
        %1421 = vmatprep.mubr.bf16.mxu0 0
        %1422 = vmatmul.mubr.bf16.gmra.mrb[0].mxu0 %v1327
        %v1423 = vpop.f32.mrb[0].mxu0
        %v1424 = vadd.f32 0.0, %v1423
        %v1425 = vpop.f32.mrb[0].mxu0
        %v1426 = vpop.f32.mrb[0].mxu0
        %v1427 = vadd.f32 0.0, %v1426
        %v1428 = vpop.f32.mrb[0].mxu0
        %1429 = vdwg.mxu0
        %v1430 = vld [vmem:[%s5] sm:$0x1]
        %v1431 = vld [vmem:[%s6] sm:$0x1]
        %v1432 = vld [vmem:[%s2] sm:$0xf]
        %v1433 = vld [vmem:[%s2 + $0x4] sm:$0xf]
        %v1434 = vld [vmem:[%s2 + $0x8] sm:$0xf]
        %v1435 = vld [vmem:[%s2 + $0xc] sm:$0xf]
        %s1436 = scalar_lea.vmem %s2, 16
        %v1437 = vld [vmem:[%s1436] sm:$0xf]
        %v1438 = vld [vmem:[%s1436 + $0x4] sm:$0xf]
        %v1439 = vld [vmem:[%s1436 + $0x8] sm:$0xf]
        %v1440 = vld [vmem:[%s1436 + $0xc] sm:$0xf]
        %v1445 = vunpack.c.l.b16 %v1437
        %v1446 = vunpack.c.l.b16 %v1438
        %v1447 = vunpack.c.l.b16 %v1439
        %v1448 = vunpack.c.l.b16 %v1440
        %v1449 = vpack.c.b16 %v1446, %v1445
        %v1450 = vpack.c.b16 %v1448, %v1447
        %1453 = vmatprep.subr.bf16.mxu0 0
        %1454 = vmatpush1.bf16.msra.mxu0 %v1449
        %1455 = vmatprep.subr.bf16.mxu0 0
        %1456 = vmatpush1.bf16.msra.mxu0 %v1450
        %1457 = vmatprep.subr.bf16.mxu0 0
        %1458 = vmatpush1.bf16.msra.mxu0 0
        %1459 = vmatprep.subr.bf16.mxu0 0
        %1460 = vmatpush1.bf16.msra.mxu0 0
        %1461 = vmatprep.subr.bf16.mxu0 0
        %1462 = vmatpush1.bf16.msra.mxu0 0
        %1463 = vmatprep.subr.bf16.mxu0 0
        %1464 = vmatpush1.bf16.msra.mxu0 0
        %1465 = vmatprep.subr.bf16.mxu0 0
        %1466 = vmatpush1.bf16.msra.mxu0 0
        %1467 = vmatprep.subr.bf16.mxu0 0
        %1468 = vmatpush1.bf16.msra.mxu0 0
        %1469 = vmatprep.subr.bf16.mxu0 0
        %1470 = vmatpush1.bf16.msra.mxu0 0
        %1471 = vmatprep.subr.bf16.mxu0 0
        %1472 = vmatpush1.bf16.msra.mxu0 0
        %1473 = vmatprep.subr.bf16.mxu0 0
        %1474 = vmatpush1.bf16.msra.mxu0 0
        %1475 = vmatprep.subr.bf16.mxu0 0
        %1476 = vmatpush1.bf16.msra.mxu0 0
        %1477 = vmatprep.subr.bf16.mxu0 0
        %1478 = vmatpush1.bf16.msra.mxu0 0
        %1479 = vmatprep.subr.bf16.mxu0 0
        %1480 = vmatpush1.bf16.msra.mxu0 0
        %1481 = vmatprep.subr.bf16.mxu0 0
        %1482 = vmatpush1.bf16.msra.mxu0 0
        %1483 = vmatprep.subr.bf16.mxu0 0
        %1484 = vmatpush1.bf16.msra.mxu0 0
        %1485 = vmatprep.mubr.bf16.mxu0 0
        %1486 = vmatmul.mubr.bf16.gmra.mrb[0].mxu0 %v513
        %v1487 = vpop.f32.mrb[0].mxu0
        %v1488 = vadd.f32 0.0, %v1487
        %v1489 = vpop.f32.mrb[0].mxu0
        %v1490 = vpop.f32.mrb[0].mxu0
        %v1491 = vadd.f32 0.0, %v1490
        %v1492 = vpop.f32.mrb[0].mxu0
        %1493 = vmatprep.mubr.bf16.mxu0 0
        %1494 = vmatmul.mubr.bf16.gmra.mrb[0].mxu0 %v516
        %v1495 = vpop.f32.mrb[0].mxu0
        %v1496 = vadd.f32 0.0, %v1495
        %v1497 = vpop.f32.mrb[0].mxu0
        %v1498 = vpop.f32.mrb[0].mxu0
        %v1499 = vadd.f32 0.0, %v1498
        %v1500 = vpop.f32.mrb[0].mxu0
        %1501 = vmatprep.mubr.bf16.mxu0 0
        %1502 = vmatmul.mubr.bf16.gmra.mrb[0].mxu0 %v519
        %v1503 = vpop.f32.mrb[0].mxu0
        %v1504 = vadd.f32 0.0, %v1503
        %v1505 = vpop.f32.mrb[0].mxu0
        %v1506 = vpop.f32.mrb[0].mxu0
        %v1507 = vadd.f32 0.0, %v1506
        %v1508 = vpop.f32.mrb[0].mxu0
        %1509 = vmatprep.mubr.bf16.mxu0 0
        %1510 = vmatmul.mubr.bf16.gmra.mrb[0].mxu0 %v522
        %v1511 = vpop.f32.mrb[0].mxu0
        %v1512 = vadd.f32 0.0, %v1511
        %v1513 = vpop.f32.mrb[0].mxu0
        %v1514 = vpop.f32.mrb[0].mxu0
        %v1515 = vadd.f32 0.0, %v1514
        %v1516 = vpop.f32.mrb[0].mxu0
        %1517 = vmatprep.mubr.bf16.mxu0 0
        %1518 = vmatmul.mubr.bf16.gmra.mrb[0].mxu0 %v525
        %v1519 = vpop.f32.mrb[0].mxu0
        %v1520 = vadd.f32 0.0, %v1519
        %v1521 = vpop.f32.mrb[0].mxu0
        %v1522 = vpop.f32.mrb[0].mxu0
        %v1523 = vadd.f32 0.0, %v1522
        %v1524 = vpop.f32.mrb[0].mxu0
        %1525 = vmatprep.mubr.bf16.mxu0 0
        %1526 = vmatmul.mubr.bf16.gmra.mrb[0].mxu0 %v528
        %v1527 = vpop.f32.mrb[0].mxu0
        %v1528 = vadd.f32 0.0, %v1527
        %v1529 = vpop.f32.mrb[0].mxu0
        %v1530 = vpop.f32.mrb[0].mxu0
        %v1531 = vadd.f32 0.0, %v1530
        %v1532 = vpop.f32.mrb[0].mxu0
        %1533 = vmatprep.mubr.bf16.mxu0 0
        %1534 = vmatmul.mubr.bf16.gmra.mrb[0].mxu0 %v531
        %v1535 = vpop.f32.mrb[0].mxu0
        %v1536 = vadd.f32 0.0, %v1535
        %v1537 = vpop.f32.mrb[0].mxu0
        %v1538 = vpop.f32.mrb[0].mxu0
        %v1539 = vadd.f32 0.0, %v1538
        %v1540 = vpop.f32.mrb[0].mxu0
        %1541 = vmatprep.mubr.bf16.mxu0 0
        %1542 = vmatmul.mubr.bf16.gmra.mrb[0].mxu0 %v534
        %v1543 = vpop.f32.mrb[0].mxu0
        %v1544 = vadd.f32 0.0, %v1543
        %v1545 = vpop.f32.mrb[0].mxu0
        %v1546 = vpop.f32.mrb[0].mxu0
        %v1547 = vadd.f32 0.0, %v1546
        %v1548 = vpop.f32.mrb[0].mxu0
        %1549 = vdwg.mxu0
        %v1554 = vunpack.c.l.b16 %v1432
        %v1555 = vunpack.c.l.b16 %v1433
        %v1556 = vunpack.c.l.b16 %v1434
        %v1557 = vunpack.c.l.b16 %v1435
        %v1558 = vpack.c.b16 %v1555, %v1554
        %v1559 = vpack.c.b16 %v1557, %v1556
        %1562 = vmatprep.subr.bf16.mxu0 0
        %1563 = vmatpush1.bf16.msra.mxu0 %v1558
        %1564 = vmatprep.subr.bf16.mxu0 0
        %1565 = vmatpush1.bf16.msra.mxu0 %v1559
        %1566 = vmatprep.subr.bf16.mxu0 0
        %1567 = vmatpush1.bf16.msra.mxu0 0
        %1568 = vmatprep.subr.bf16.mxu0 0
        %1569 = vmatpush1.bf16.msra.mxu0 0
        %1570 = vmatprep.subr.bf16.mxu0 0
        %1571 = vmatpush1.bf16.msra.mxu0 0
        %1572 = vmatprep.subr.bf16.mxu0 0
        %1573 = vmatpush1.bf16.msra.mxu0 0
        %1574 = vmatprep.subr.bf16.mxu0 0
        %1575 = vmatpush1.bf16.msra.mxu0 0
        %1576 = vmatprep.subr.bf16.mxu0 0
        %1577 = vmatpush1.bf16.msra.mxu0 0
        %1578 = vmatprep.subr.bf16.mxu0 0
        %1579 = vmatpush1.bf16.msra.mxu0 0
        %1580 = vmatprep.subr.bf16.mxu0 0
        %1581 = vmatpush1.bf16.msra.mxu0 0
        %1582 = vmatprep.subr.bf16.mxu0 0
        %1583 = vmatpush1.bf16.msra.mxu0 0
        %1584 = vmatprep.subr.bf16.mxu0 0
        %1585 = vmatpush1.bf16.msra.mxu0 0
        %1586 = vmatprep.subr.bf16.mxu0 0
        %1587 = vmatpush1.bf16.msra.mxu0 0
        %1588 = vmatprep.subr.bf16.mxu0 0
        %1589 = vmatpush1.bf16.msra.mxu0 0
        %1590 = vmatprep.subr.bf16.mxu0 0
        %1591 = vmatpush1.bf16.msra.mxu0 0
        %1592 = vmatprep.subr.bf16.mxu0 0
        %1593 = vmatpush1.bf16.msra.mxu0 0
        %1594 = vmatprep.mubr.bf16.mxu0 0
        %1595 = vmatmul.mubr.bf16.gmra.mrb[0].mxu0 %v645
        %v1596 = vpop.f32.mrb[0].mxu0
        %v1597 = vadd.f32 %v1488, %v1596
        %v1598 = vpop.f32.mrb[0].mxu0
        %v1599 = vpop.f32.mrb[0].mxu0
        %v1600 = vadd.f32 %v1491, %v1599
        %v1601 = vpop.f32.mrb[0].mxu0
        %1602 = vmatprep.mubr.bf16.mxu0 0
        %1603 = vmatmul.mubr.bf16.gmra.mrb[0].mxu0 %v647
        %v1604 = vpop.f32.mrb[0].mxu0
        %v1605 = vadd.f32 %v1496, %v1604
        %v1606 = vpop.f32.mrb[0].mxu0
        %v1607 = vpop.f32.mrb[0].mxu0
        %v1608 = vadd.f32 %v1499, %v1607
        %v1609 = vpop.f32.mrb[0].mxu0
        %1610 = vmatprep.mubr.bf16.mxu0 0
        %1611 = vmatmul.mubr.bf16.gmra.mrb[0].mxu0 %v649
        %v1612 = vpop.f32.mrb[0].mxu0
        %v1613 = vadd.f32 %v1504, %v1612
        %v1614 = vpop.f32.mrb[0].mxu0
        %v1615 = vpop.f32.mrb[0].mxu0
        %v1616 = vadd.f32 %v1507, %v1615
        %v1617 = vpop.f32.mrb[0].mxu0
        %1618 = vmatprep.mubr.bf16.mxu0 0
        %1619 = vmatmul.mubr.bf16.gmra.mrb[0].mxu0 %v651
        %v1620 = vpop.f32.mrb[0].mxu0
        %v1621 = vadd.f32 %v1512, %v1620
        %v1622 = vpop.f32.mrb[0].mxu0
        %v1623 = vpop.f32.mrb[0].mxu0
        %v1624 = vadd.f32 %v1515, %v1623
        %v1625 = vpop.f32.mrb[0].mxu0
        %1626 = vmatprep.mubr.bf16.mxu0 0
        %1627 = vmatmul.mubr.bf16.gmra.mrb[0].mxu0 %v653
        %v1628 = vpop.f32.mrb[0].mxu0
        %v1629 = vadd.f32 %v1520, %v1628
        %v1630 = vpop.f32.mrb[0].mxu0
        %v1631 = vpop.f32.mrb[0].mxu0
        %v1632 = vadd.f32 %v1523, %v1631
        %v1633 = vpop.f32.mrb[0].mxu0
        %1634 = vmatprep.mubr.bf16.mxu0 0
        %1635 = vmatmul.mubr.bf16.gmra.mrb[0].mxu0 %v655
        %v1636 = vpop.f32.mrb[0].mxu0
        %v1637 = vadd.f32 %v1528, %v1636
        %v1638 = vpop.f32.mrb[0].mxu0
        %v1639 = vpop.f32.mrb[0].mxu0
        %v1640 = vadd.f32 %v1531, %v1639
        %v1641 = vpop.f32.mrb[0].mxu0
        %1642 = vmatprep.mubr.bf16.mxu0 0
        %1643 = vmatmul.mubr.bf16.gmra.mrb[0].mxu0 %v657
        %v1644 = vpop.f32.mrb[0].mxu0
        %v1645 = vadd.f32 %v1536, %v1644
        %v1646 = vpop.f32.mrb[0].mxu0
        %v1647 = vpop.f32.mrb[0].mxu0
        %v1648 = vadd.f32 %v1539, %v1647
        %v1649 = vpop.f32.mrb[0].mxu0
        %1650 = vmatprep.mubr.bf16.mxu0 0
        %1651 = vmatmul.mubr.bf16.gmra.mrb[0].mxu0 %v659
        %v1652 = vpop.f32.mrb[0].mxu0
        %v1653 = vadd.f32 %v1544, %v1652
        %v1654 = vpop.f32.mrb[0].mxu0
        %v1655 = vpop.f32.mrb[0].mxu0
        %v1656 = vadd.f32 %v1547, %v1655
        %v1657 = vpop.f32.mrb[0].mxu0
        %1658 = vdwg.mxu0
        %s1659 = scalar_lea.vmem %s2, 32
        %v1660 = vld [vmem:[%s1659] sm:$0xf]
        %v1661 = vld [vmem:[%s1659 + $0x4] sm:$0xf]
        %v1662 = vld [vmem:[%s1659 + $0x8] sm:$0xf]
        %v1663 = vld [vmem:[%s1659 + $0xc] sm:$0xf]
        %v1668 = vunpack.c.l.b16 %v1660
        %v1669 = vunpack.c.l.b16 %v1661
        %v1670 = vunpack.c.l.b16 %v1662
        %v1671 = vunpack.c.l.b16 %v1663
        %v1672 = vpack.c.b16 %v1669, %v1668
        %v1673 = vpack.c.b16 %v1671, %v1670
        %1676 = vmatprep.subr.bf16.mxu0 0
        %1677 = vmatpush1.bf16.msra.mxu0 %v1672
        %1678 = vmatprep.subr.bf16.mxu0 0
        %1679 = vmatpush1.bf16.msra.mxu0 %v1673
        %1680 = vmatprep.subr.bf16.mxu0 0
        %1681 = vmatpush1.bf16.msra.mxu0 0
        %1682 = vmatprep.subr.bf16.mxu0 0
        %1683 = vmatpush1.bf16.msra.mxu0 0
        %1684 = vmatprep.subr.bf16.mxu0 0
        %1685 = vmatpush1.bf16.msra.mxu0 0
        %1686 = vmatprep.subr.bf16.mxu0 0
        %1687 = vmatpush1.bf16.msra.mxu0 0
        %1688 = vmatprep.subr.bf16.mxu0 0
        %1689 = vmatpush1.bf16.msra.mxu0 0
        %1690 = vmatprep.subr.bf16.mxu0 0
        %1691 = vmatpush1.bf16.msra.mxu0 0
        %1692 = vmatprep.subr.bf16.mxu0 0
        %1693 = vmatpush1.bf16.msra.mxu0 0
        %1694 = vmatprep.subr.bf16.mxu0 0
        %1695 = vmatpush1.bf16.msra.mxu0 0
        %1696 = vmatprep.subr.bf16.mxu0 0
        %1697 = vmatpush1.bf16.msra.mxu0 0
        %1698 = vmatprep.subr.bf16.mxu0 0
        %1699 = vmatpush1.bf16.msra.mxu0 0
        %1700 = vmatprep.subr.bf16.mxu0 0
        %1701 = vmatpush1.bf16.msra.mxu0 0
        %1702 = vmatprep.subr.bf16.mxu0 0
        %1703 = vmatpush1.bf16.msra.mxu0 0
        %1704 = vmatprep.subr.bf16.mxu0 0
        %1705 = vmatpush1.bf16.msra.mxu0 0
        %1706 = vmatprep.subr.bf16.mxu0 0
        %1707 = vmatpush1.bf16.msra.mxu0 0
        %1708 = vmatprep.mubr.bf16.mxu0 0
        %1709 = vmatmul.mubr.bf16.gmra.mrb[0].mxu0 %v794
        %v1710 = vpop.f32.mrb[0].mxu0
        %v1711 = vadd.f32 0.0, %v1710
        %v1712 = vpop.f32.mrb[0].mxu0
        %v1713 = vpop.f32.mrb[0].mxu0
        %v1714 = vadd.f32 0.0, %v1713
        %v1715 = vpop.f32.mrb[0].mxu0
        %1716 = vmatprep.mubr.bf16.mxu0 0
        %1717 = vmatmul.mubr.bf16.gmra.mrb[0].mxu0 %v797
        %v1718 = vpop.f32.mrb[0].mxu0
        %v1719 = vadd.f32 0.0, %v1718
        %v1720 = vpop.f32.mrb[0].mxu0
        %v1721 = vpop.f32.mrb[0].mxu0
        %v1722 = vadd.f32 0.0, %v1721
        %v1723 = vpop.f32.mrb[0].mxu0
        %1724 = vmatprep.mubr.bf16.mxu0 0
        %1725 = vmatmul.mubr.bf16.gmra.mrb[0].mxu0 %v800
        %v1726 = vpop.f32.mrb[0].mxu0
        %v1727 = vadd.f32 0.0, %v1726
        %v1728 = vpop.f32.mrb[0].mxu0
        %v1729 = vpop.f32.mrb[0].mxu0
        %v1730 = vadd.f32 0.0, %v1729
        %v1731 = vpop.f32.mrb[0].mxu0
        %1732 = vmatprep.mubr.bf16.mxu0 0
        %1733 = vmatmul.mubr.bf16.gmra.mrb[0].mxu0 %v803
        %v1734 = vpop.f32.mrb[0].mxu0
        %v1735 = vadd.f32 0.0, %v1734
        %v1736 = vpop.f32.mrb[0].mxu0
        %v1737 = vpop.f32.mrb[0].mxu0
        %v1738 = vadd.f32 0.0, %v1737
        %v1739 = vpop.f32.mrb[0].mxu0
        %1740 = vmatprep.mubr.bf16.mxu0 0
        %1741 = vmatmul.mubr.bf16.gmra.mrb[0].mxu0 %v806
        %v1742 = vpop.f32.mrb[0].mxu0
        %v1743 = vadd.f32 0.0, %v1742
        %v1744 = vpop.f32.mrb[0].mxu0
        %v1745 = vpop.f32.mrb[0].mxu0
        %v1746 = vadd.f32 0.0, %v1745
        %v1747 = vpop.f32.mrb[0].mxu0
        %1748 = vmatprep.mubr.bf16.mxu0 0
        %1749 = vmatmul.mubr.bf16.gmra.mrb[0].mxu0 %v809
        %v1750 = vpop.f32.mrb[0].mxu0
        %v1751 = vadd.f32 0.0, %v1750
        %v1752 = vpop.f32.mrb[0].mxu0
        %v1753 = vpop.f32.mrb[0].mxu0
        %v1754 = vadd.f32 0.0, %v1753
        %v1755 = vpop.f32.mrb[0].mxu0
        %1756 = vmatprep.mubr.bf16.mxu0 0
        %1757 = vmatmul.mubr.bf16.gmra.mrb[0].mxu0 %v812
        %v1758 = vpop.f32.mrb[0].mxu0
        %v1759 = vadd.f32 0.0, %v1758
        %v1760 = vpop.f32.mrb[0].mxu0
        %v1761 = vpop.f32.mrb[0].mxu0
        %v1762 = vadd.f32 0.0, %v1761
        %v1763 = vpop.f32.mrb[0].mxu0
        %1764 = vmatprep.mubr.bf16.mxu0 0
        %1765 = vmatmul.mubr.bf16.gmra.mrb[0].mxu0 %v815
        %v1766 = vpop.f32.mrb[0].mxu0
        %v1767 = vadd.f32 0.0, %v1766
        %v1768 = vpop.f32.mrb[0].mxu0
        %v1769 = vpop.f32.mrb[0].mxu0
        %v1770 = vadd.f32 0.0, %v1769
        %v1771 = vpop.f32.mrb[0].mxu0
        %1772 = vdwg.mxu0
        %v1773 = vadd.f32 %v1597, %v1711
        %v1774 = vadd.f32 %v1600, %v1714
        %v1775 = vadd.f32 %v1605, %v1719
        %v1776 = vadd.f32 %v1608, %v1722
        %v1777 = vadd.f32 %v1613, %v1727
        %v1778 = vadd.f32 %v1616, %v1730
        %v1779 = vadd.f32 %v1621, %v1735
        %v1780 = vadd.f32 %v1624, %v1738
        %v1781 = vadd.f32 %v1629, %v1743
        %v1782 = vadd.f32 %v1632, %v1746
        %v1783 = vadd.f32 %v1637, %v1751
        %v1784 = vadd.f32 %v1640, %v1754
        %v1785 = vadd.f32 %v1645, %v1759
        %v1786 = vadd.f32 %v1648, %v1762
        %v1787 = vadd.f32 %v1653, %v1767
        %v1788 = vadd.f32 %v1656, %v1770
        %v1790 = vlaneseq
        %v1791 = vshrl.u32 %v1790, 7
        %v1792 = vsub.s32 0, %v1791
        %v1793 = vrot.slane %v1430, %v1792
        %v1795 = vmul.f32 %v1773, %v1793
        %v1796 = vmul.f32 %v1774, %v1793
        %v1797 = vmul.f32 %v1775, %v1793
        %v1798 = vmul.f32 %v1776, %v1793
        %v1799 = vmul.f32 %v1777, %v1793
        %v1800 = vmul.f32 %v1778, %v1793
        %v1801 = vmul.f32 %v1779, %v1793
        %v1802 = vmul.f32 %v1780, %v1793
        %v1803 = vmul.f32 %v1781, %v1793
        %v1804 = vmul.f32 %v1782, %v1793
        %v1805 = vmul.f32 %v1783, %v1793
        %v1806 = vmul.f32 %v1784, %v1793
        %v1807 = vmul.f32 %v1785, %v1793
        %v1808 = vmul.f32 %v1786, %v1793
        %v1809 = vmul.f32 %v1787, %v1793
        %v1810 = vmul.f32 %v1788, %v1793
        %v1812 = vlaneseq
        %v1813 = vshrl.u32 %v1812, 7
        %v1814 = vsub.s32 0, %v1813
        %v1815 = vrot.slane %v1431, %v1814
        %v1817 = vadd.f32 %v1795, %v1815
        %v1818 = vadd.f32 %v1796, %v1815
        %v1819 = vadd.f32 %v1797, %v1815
        %v1820 = vadd.f32 %v1798, %v1815
        %v1821 = vadd.f32 %v1799, %v1815
        %v1822 = vadd.f32 %v1800, %v1815
        %v1823 = vadd.f32 %v1801, %v1815
        %v1824 = vadd.f32 %v1802, %v1815
        %v1825 = vadd.f32 %v1803, %v1815
        %v1826 = vadd.f32 %v1804, %v1815
        %v1827 = vadd.f32 %v1805, %v1815
        %v1828 = vadd.f32 %v1806, %v1815
        %v1829 = vadd.f32 %v1807, %v1815
        %v1830 = vadd.f32 %v1808, %v1815
        %v1831 = vadd.f32 %v1809, %v1815
        %v1832 = vadd.f32 %v1810, %v1815
        %v1833 = vxor.u32 %v1817, 2147483648
        %v1834 = vxor.u32 %v1818, 2147483648
        %v1835 = vxor.u32 %v1819, 2147483648
        %v1836 = vxor.u32 %v1820, 2147483648
        %v1837 = vxor.u32 %v1821, 2147483648
        %v1838 = vxor.u32 %v1822, 2147483648
        %v1839 = vxor.u32 %v1823, 2147483648
        %v1840 = vxor.u32 %v1824, 2147483648
        %v1841 = vxor.u32 %v1825, 2147483648
        %v1842 = vxor.u32 %v1826, 2147483648
        %v1843 = vxor.u32 %v1827, 2147483648
        %v1844 = vxor.u32 %v1828, 2147483648
        %v1845 = vxor.u32 %v1829, 2147483648
        %v1846 = vxor.u32 %v1830, 2147483648
        %v1847 = vxor.u32 %v1831, 2147483648
        %v1848 = vxor.u32 %v1832, 2147483648
        %v1849 = vmul.f32 %v1833, 1.442695
        %v1850 = vpow.pop %v1849
        %v1851 = vmul.f32 %v1834, 1.442695
        %v1852 = vpow.pop %v1851
        %v1853 = vmul.f32 %v1835, 1.442695
        %v1854 = vpow.pop %v1853
        %v1855 = vmul.f32 %v1836, 1.442695
        %v1856 = vpow.pop %v1855
        %v1857 = vmul.f32 %v1837, 1.442695
        %v1858 = vpow.pop %v1857
        %v1859 = vmul.f32 %v1838, 1.442695
        %v1860 = vpow.pop %v1859
        %v1861 = vmul.f32 %v1839, 1.442695
        %v1862 = vpow.pop %v1861
        %v1863 = vmul.f32 %v1840, 1.442695
        %v1864 = vpow.pop %v1863
        %v1865 = vmul.f32 %v1841, 1.442695
        %v1866 = vpow.pop %v1865
        %v1867 = vmul.f32 %v1842, 1.442695
        %v1868 = vpow.pop %v1867
        %v1869 = vmul.f32 %v1843, 1.442695
        %v1870 = vpow.pop %v1869
        %v1871 = vmul.f32 %v1844, 1.442695
        %v1872 = vpow.pop %v1871
        %v1873 = vmul.f32 %v1845, 1.442695
        %v1874 = vpow.pop %v1873
        %v1875 = vmul.f32 %v1846, 1.442695
        %v1876 = vpow.pop %v1875
        %v1877 = vmul.f32 %v1847, 1.442695
        %v1878 = vpow.pop %v1877
        %v1879 = vmul.f32 %v1848, 1.442695
        %v1880 = vpow.pop %v1879
        %v1881 = vadd.f32 %v1850, 1.0
        %v1882 = vadd.f32 %v1852, 1.0
        %v1883 = vadd.f32 %v1854, 1.0
        %v1884 = vadd.f32 %v1856, 1.0
        %v1885 = vadd.f32 %v1858, 1.0
        %v1886 = vadd.f32 %v1860, 1.0
        %v1887 = vadd.f32 %v1862, 1.0
        %v1888 = vadd.f32 %v1864, 1.0
        %v1889 = vadd.f32 %v1866, 1.0
        %v1890 = vadd.f32 %v1868, 1.0
        %v1891 = vadd.f32 %v1870, 1.0
        %v1892 = vadd.f32 %v1872, 1.0
        %v1893 = vadd.f32 %v1874, 1.0
        %v1894 = vadd.f32 %v1876, 1.0
        %v1895 = vadd.f32 %v1878, 1.0
        %v1896 = vadd.f32 %v1880, 1.0
        %v1897 = vrcp.pop %v1881
        %v1898 = vmul.f32 1.0, %v1897
        %v1899 = vrcp.pop %v1882
        %v1900 = vmul.f32 1.0, %v1899
        %v1901 = vrcp.pop %v1883
        %v1902 = vmul.f32 1.0, %v1901
        %v1903 = vrcp.pop %v1884
        %v1904 = vmul.f32 1.0, %v1903
        %v1905 = vrcp.pop %v1885
        %v1906 = vmul.f32 1.0, %v1905
        %v1907 = vrcp.pop %v1886
        %v1908 = vmul.f32 1.0, %v1907
        %v1909 = vrcp.pop %v1887
        %v1910 = vmul.f32 1.0, %v1909
        %v1911 = vrcp.pop %v1888
        %v1912 = vmul.f32 1.0, %v1911
        %v1913 = vrcp.pop %v1889
        %v1914 = vmul.f32 1.0, %v1913
        %v1915 = vrcp.pop %v1890
        %v1916 = vmul.f32 1.0, %v1915
        %v1917 = vrcp.pop %v1891
        %v1918 = vmul.f32 1.0, %v1917
        %v1919 = vrcp.pop %v1892
        %v1920 = vmul.f32 1.0, %v1919
        %v1921 = vrcp.pop %v1893
        %v1922 = vmul.f32 1.0, %v1921
        %v1923 = vrcp.pop %v1894
        %v1924 = vmul.f32 1.0, %v1923
        %v1925 = vrcp.pop %v1895
        %v1926 = vmul.f32 1.0, %v1925
        %v1927 = vrcp.pop %v1896
        %v1928 = vmul.f32 1.0, %v1927
        %v1929 = vmul.f32 %v1817, %v1898
        %v1930 = vmul.f32 %v1818, %v1900
        %v1931 = vmul.f32 %v1819, %v1902
        %v1932 = vmul.f32 %v1820, %v1904
        %v1933 = vmul.f32 %v1821, %v1906
        %v1934 = vmul.f32 %v1822, %v1908
        %v1935 = vmul.f32 %v1823, %v1910
        %v1936 = vmul.f32 %v1824, %v1912
        %v1937 = vmul.f32 %v1825, %v1914
        %v1938 = vmul.f32 %v1826, %v1916
        %v1939 = vmul.f32 %v1827, %v1918
        %v1940 = vmul.f32 %v1828, %v1920
        %v1941 = vmul.f32 %v1829, %v1922
        %v1942 = vmul.f32 %v1830, %v1924
        %v1943 = vmul.f32 %v1831, %v1926
        %v1944 = vmul.f32 %v1832, %v1928
        %v1945 = vsel %vm1086, %v1929, 0.0
        %1946 = vadd.xlane.f32.xlu0 %v1945
        %v1947 = vpop.xlane.xlu0 %1946
        %v1948 = vsel %vm1086, %v1930, 0.0
        %1949 = vadd.xlane.f32.xlu0 %v1948
        %v1950 = vpop.xlane.xlu0 %1949
        %v1951 = vsel %vm1086, %v1931, 0.0
        %1952 = vadd.xlane.f32.xlu0 %v1951
        %v1953 = vpop.xlane.xlu0 %1952
        %v1954 = vsel %vm1086, %v1932, 0.0
        %1955 = vadd.xlane.f32.xlu0 %v1954
        %v1956 = vpop.xlane.xlu0 %1955
        %v1957 = vsel %vm1086, %v1933, 0.0
        %1958 = vadd.xlane.f32.xlu0 %v1957
        %v1959 = vpop.xlane.xlu0 %1958
        %v1960 = vsel %vm1086, %v1934, 0.0
        %1961 = vadd.xlane.f32.xlu0 %v1960
        %v1962 = vpop.xlane.xlu0 %1961
        %v1963 = vsel %vm1086, %v1935, 0.0
        %1964 = vadd.xlane.f32.xlu0 %v1963
        %v1965 = vpop.xlane.xlu0 %1964
        %v1966 = vsel %vm1086, %v1936, 0.0
        %1967 = vadd.xlane.f32.xlu0 %v1966
        %v1968 = vpop.xlane.xlu0 %1967
        %v1969 = vsel %vm1086, %v1937, 0.0
        %1970 = vadd.xlane.f32.xlu0 %v1969
        %v1971 = vpop.xlane.xlu0 %1970
        %v1972 = vsel %vm1086, %v1938, 0.0
        %1973 = vadd.xlane.f32.xlu0 %v1972
        %v1974 = vpop.xlane.xlu0 %1973
        %v1975 = vsel %vm1086, %v1939, 0.0
        %1976 = vadd.xlane.f32.xlu0 %v1975
        %v1977 = vpop.xlane.xlu0 %1976
        %v1978 = vsel %vm1086, %v1940, 0.0
        %1979 = vadd.xlane.f32.xlu0 %v1978
        %v1980 = vpop.xlane.xlu0 %1979
        %v1981 = vsel %vm1086, %v1941, 0.0
        %1982 = vadd.xlane.f32.xlu0 %v1981
        %v1983 = vpop.xlane.xlu0 %1982
        %v1984 = vsel %vm1086, %v1942, 0.0
        %1985 = vadd.xlane.f32.xlu0 %v1984
        %v1986 = vpop.xlane.xlu0 %1985
        %v1987 = vsel %vm1086, %v1943, 0.0
        %1988 = vadd.xlane.f32.xlu0 %v1987
        %v1989 = vpop.xlane.xlu0 %1988
        %v1990 = vsel %vm1086, %v1944, 0.0
        %1991 = vadd.xlane.f32.xlu0 %v1990
        %v1992 = vpop.xlane.xlu0 %1991
        %v1993 = vmul.f32 %v1947, %v1135
        %v1994 = vmul.f32 %v1950, %v1135
        %v1995 = vmul.f32 %v1953, %v1135
        %v1996 = vmul.f32 %v1956, %v1135
        %v1997 = vmul.f32 %v1959, %v1135
        %v1998 = vmul.f32 %v1962, %v1135
        %v1999 = vmul.f32 %v1965, %v1135
        %v2000 = vmul.f32 %v1968, %v1135
        %v2001 = vmul.f32 %v1971, %v1135
        %v2002 = vmul.f32 %v1974, %v1135
        %v2003 = vmul.f32 %v1977, %v1135
        %v2004 = vmul.f32 %v1980, %v1135
        %v2005 = vmul.f32 %v1983, %v1135
        %v2006 = vmul.f32 %v1986, %v1135
        %v2007 = vmul.f32 %v1989, %v1135
        %v2008 = vmul.f32 %v1992, %v1135
        %v2009 = vsub.f32 %v1929, %v1993
        %v2010 = vsub.f32 %v1930, %v1994
        %v2011 = vsub.f32 %v1931, %v1995
        %v2012 = vsub.f32 %v1932, %v1996
        %v2013 = vsub.f32 %v1933, %v1997
        %v2014 = vsub.f32 %v1934, %v1998
        %v2015 = vsub.f32 %v1935, %v1999
        %v2016 = vsub.f32 %v1936, %v2000
        %v2017 = vsub.f32 %v1937, %v2001
        %v2018 = vsub.f32 %v1938, %v2002
        %v2019 = vsub.f32 %v1939, %v2003
        %v2020 = vsub.f32 %v1940, %v2004
        %v2021 = vsub.f32 %v1941, %v2005
        %v2022 = vsub.f32 %v1942, %v2006
        %v2023 = vsub.f32 %v1943, %v2007
        %v2024 = vsub.f32 %v1944, %v2008
        %v2025 = vmul.f32 %v2009, %v2009
        %v2026 = vmul.f32 %v2010, %v2010
        %v2027 = vmul.f32 %v2011, %v2011
        %v2028 = vmul.f32 %v2012, %v2012
        %v2029 = vmul.f32 %v2013, %v2013
        %v2030 = vmul.f32 %v2014, %v2014
        %v2031 = vmul.f32 %v2015, %v2015
        %v2032 = vmul.f32 %v2016, %v2016
        %v2033 = vmul.f32 %v2017, %v2017
        %v2034 = vmul.f32 %v2018, %v2018
        %v2035 = vmul.f32 %v2019, %v2019
        %v2036 = vmul.f32 %v2020, %v2020
        %v2037 = vmul.f32 %v2021, %v2021
        %v2038 = vmul.f32 %v2022, %v2022
        %v2039 = vmul.f32 %v2023, %v2023
        %v2040 = vmul.f32 %v2024, %v2024
        %v2041 = vsel %vm1086, %v2025, 0.0
        %2042 = vadd.xlane.f32.xlu0 %v2041
        %v2043 = vpop.xlane.xlu0 %2042
        %v2044 = vsel %vm1086, %v2026, 0.0
        %2045 = vadd.xlane.f32.xlu0 %v2044
        %v2046 = vpop.xlane.xlu0 %2045
        %v2047 = vsel %vm1086, %v2027, 0.0
        %2048 = vadd.xlane.f32.xlu0 %v2047
        %v2049 = vpop.xlane.xlu0 %2048
        %v2050 = vsel %vm1086, %v2028, 0.0
        %2051 = vadd.xlane.f32.xlu0 %v2050
        %v2052 = vpop.xlane.xlu0 %2051
        %v2053 = vsel %vm1086, %v2029, 0.0
        %2054 = vadd.xlane.f32.xlu0 %v2053
        %v2055 = vpop.xlane.xlu0 %2054
        %v2056 = vsel %vm1086, %v2030, 0.0
        %2057 = vadd.xlane.f32.xlu0 %v2056
        %v2058 = vpop.xlane.xlu0 %2057
        %v2059 = vsel %vm1086, %v2031, 0.0
        %2060 = vadd.xlane.f32.xlu0 %v2059
        %v2061 = vpop.xlane.xlu0 %2060
        %v2062 = vsel %vm1086, %v2032, 0.0
        %2063 = vadd.xlane.f32.xlu0 %v2062
        %v2064 = vpop.xlane.xlu0 %2063
        %v2065 = vsel %vm1086, %v2033, 0.0
        %2066 = vadd.xlane.f32.xlu0 %v2065
        %v2067 = vpop.xlane.xlu0 %2066
        %v2068 = vsel %vm1086, %v2034, 0.0
        %2069 = vadd.xlane.f32.xlu0 %v2068
        %v2070 = vpop.xlane.xlu0 %2069
        %v2071 = vsel %vm1086, %v2035, 0.0
        %2072 = vadd.xlane.f32.xlu0 %v2071
        %v2073 = vpop.xlane.xlu0 %2072
        %v2074 = vsel %vm1086, %v2036, 0.0
        %2075 = vadd.xlane.f32.xlu0 %v2074
        %v2076 = vpop.xlane.xlu0 %2075
        %v2077 = vsel %vm1086, %v2037, 0.0
        %2078 = vadd.xlane.f32.xlu0 %v2077
        %v2079 = vpop.xlane.xlu0 %2078
        %v2080 = vsel %vm1086, %v2038, 0.0
        %2081 = vadd.xlane.f32.xlu0 %v2080
        %v2082 = vpop.xlane.xlu0 %2081
        %v2083 = vsel %vm1086, %v2039, 0.0
        %2084 = vadd.xlane.f32.xlu0 %v2083
        %v2085 = vpop.xlane.xlu0 %2084
        %v2086 = vsel %vm1086, %v2040, 0.0
        %2087 = vadd.xlane.f32.xlu0 %v2086
        %v2088 = vpop.xlane.xlu0 %2087
        %v2089 = vmul.f32 %v2043, %v1135
        %v2090 = vmul.f32 %v2046, %v1135
        %v2091 = vmul.f32 %v2049, %v1135
        %v2092 = vmul.f32 %v2052, %v1135
        %v2093 = vmul.f32 %v2055, %v1135
        %v2094 = vmul.f32 %v2058, %v1135
        %v2095 = vmul.f32 %v2061, %v1135
        %v2096 = vmul.f32 %v2064, %v1135
        %v2097 = vmul.f32 %v2067, %v1135
        %v2098 = vmul.f32 %v2070, %v1135
        %v2099 = vmul.f32 %v2073, %v1135
        %v2100 = vmul.f32 %v2076, %v1135
        %v2101 = vmul.f32 %v2079, %v1135
        %v2102 = vmul.f32 %v2082, %v1135
        %v2103 = vmul.f32 %v2085, %v1135
        %v2104 = vmul.f32 %v2088, %v1135
        %v2105 = vadd.f32 %v2089, 1e-05
        %v2106 = vadd.f32 %v2090, 1e-05
        %v2107 = vadd.f32 %v2091, 1e-05
        %v2108 = vadd.f32 %v2092, 1e-05
        %v2109 = vadd.f32 %v2093, 1e-05
        %v2110 = vadd.f32 %v2094, 1e-05
        %v2111 = vadd.f32 %v2095, 1e-05
        %v2112 = vadd.f32 %v2096, 1e-05
        %v2113 = vadd.f32 %v2097, 1e-05
        %v2114 = vadd.f32 %v2098, 1e-05
        %v2115 = vadd.f32 %v2099, 1e-05
        %v2116 = vadd.f32 %v2100, 1e-05
        %v2117 = vadd.f32 %v2101, 1e-05
        %v2118 = vadd.f32 %v2102, 1e-05
        %v2119 = vadd.f32 %v2103, 1e-05
        %v2120 = vadd.f32 %v2104, 1e-05
        %v2121 = vrsqrt.pop %v2105
        %v2122 = vrsqrt.pop %v2106
        %v2123 = vrsqrt.pop %v2107
        %v2124 = vrsqrt.pop %v2108
        %v2125 = vrsqrt.pop %v2109
        %v2126 = vrsqrt.pop %v2110
        %v2127 = vrsqrt.pop %v2111
        %v2128 = vrsqrt.pop %v2112
        %v2129 = vrsqrt.pop %v2113
        %v2130 = vrsqrt.pop %v2114
        %v2131 = vrsqrt.pop %v2115
        %v2132 = vrsqrt.pop %v2116
        %v2133 = vrsqrt.pop %v2117
        %v2134 = vrsqrt.pop %v2118
        %v2135 = vrsqrt.pop %v2119
        %v2136 = vrsqrt.pop %v2120
        %v2137 = vmul.f32 %v2009, %v2121
        %v2138 = vmul.f32 %v2010, %v2122
        %v2139 = vmul.f32 %v2011, %v2123
        %v2140 = vmul.f32 %v2012, %v2124
        %v2141 = vmul.f32 %v2013, %v2125
        %v2142 = vmul.f32 %v2014, %v2126
        %v2143 = vmul.f32 %v2015, %v2127
        %v2144 = vmul.f32 %v2016, %v2128
        %v2145 = vmul.f32 %v2017, %v2129
        %v2146 = vmul.f32 %v2018, %v2130
        %v2147 = vmul.f32 %v2019, %v2131
        %v2148 = vmul.f32 %v2020, %v2132
        %v2149 = vmul.f32 %v2021, %v2133
        %v2150 = vmul.f32 %v2022, %v2134
        %v2151 = vmul.f32 %v2023, %v2135
        %v2152 = vmul.f32 %v2024, %v2136
        %v2153 = vpack.c.bf16 %v2138, %v2137
        %v2154 = vpack.c.bf16 %v2140, %v2139
        %v2155 = vpack.c.bf16 %v2142, %v2141
        %v2156 = vpack.c.bf16 %v2144, %v2143
        %v2157 = vpack.c.bf16 %v2146, %v2145
        %v2158 = vpack.c.bf16 %v2148, %v2147
        %v2159 = vpack.c.bf16 %v2150, %v2149
        %v2160 = vpack.c.bf16 %v2152, %v2151
        %v2161 = vld [vmem:[%s8] sm:$0xf]
        %v2163 = vsel %vm1086, %v2153, 0
        %v2166 = vsel %vm1086, %v2154, 0
        %v2169 = vsel %vm1086, %v2155, 0
        %v2172 = vsel %vm1086, %v2156, 0
        %v2175 = vsel %vm1086, %v2157, 0
        %v2178 = vsel %vm1086, %v2158, 0
        %v2181 = vsel %vm1086, %v2159, 0
        %v2184 = vsel %vm1086, %v2160, 0
        %v2187 = vsel %vm1329, %v2161, 0
        %2189 = vmatprep.subr.bf16.mxu0 0
        %2190 = vmatpush1.bf16.msra.mxu0 %v2187
        %2191 = vmatprep.subr.bf16.mxu0 0
        %2192 = vmatpush1.bf16.msra.mxu0 0
        %2193 = vmatprep.subr.bf16.mxu0 0
        %2194 = vmatpush1.bf16.msra.mxu0 0
        %2195 = vmatprep.subr.bf16.mxu0 0
        %2196 = vmatpush1.bf16.msra.mxu0 0
        %2197 = vmatprep.subr.bf16.mxu0 0
        %2198 = vmatpush1.bf16.msra.mxu0 0
        %2199 = vmatprep.subr.bf16.mxu0 0
        %2200 = vmatpush1.bf16.msra.mxu0 0
        %2201 = vmatprep.subr.bf16.mxu0 0
        %2202 = vmatpush1.bf16.msra.mxu0 0
        %2203 = vmatprep.subr.bf16.mxu0 0
        %2204 = vmatpush1.bf16.msra.mxu0 0
        %2205 = vmatprep.subr.bf16.mxu0 0
        %2206 = vmatpush1.bf16.msra.mxu0 0
        %2207 = vmatprep.subr.bf16.mxu0 0
        %2208 = vmatpush1.bf16.msra.mxu0 0
        %2209 = vmatprep.subr.bf16.mxu0 0
        %2210 = vmatpush1.bf16.msra.mxu0 0
        %2211 = vmatprep.subr.bf16.mxu0 0
        %2212 = vmatpush1.bf16.msra.mxu0 0
        %2213 = vmatprep.subr.bf16.mxu0 0
        %2214 = vmatpush1.bf16.msra.mxu0 0
        %2215 = vmatprep.subr.bf16.mxu0 0
        %2216 = vmatpush1.bf16.msra.mxu0 0
        %2217 = vmatprep.subr.bf16.mxu0 0
        %2218 = vmatpush1.bf16.msra.mxu0 0
        %2219 = vmatprep.subr.bf16.mxu0 0
        %2220 = vmatpush1.bf16.msra.mxu0 0
        %2221 = vmatprep.mubr.bf16.mxu0 0
        %2222 = vmatmul.mubr.bf16.gmra.mrb[0].mxu0 %v2163
        %v2223 = vpop.f32.mrb[0].mxu0
        %v2224 = vadd.f32 0.0, %v2223
        %v2225 = vpop.f32.mrb[0].mxu0
        %v2226 = vpop.f32.mrb[0].mxu0
        %v2227 = vadd.f32 0.0, %v2226
        %v2228 = vpop.f32.mrb[0].mxu0
        %2229 = vmatprep.mubr.bf16.mxu0 0
        %2230 = vmatmul.mubr.bf16.gmra.mrb[0].mxu0 %v2166
        %v2231 = vpop.f32.mrb[0].mxu0
        %v2232 = vadd.f32 0.0, %v2231
        %v2233 = vpop.f32.mrb[0].mxu0
        %v2234 = vpop.f32.mrb[0].mxu0
        %v2235 = vadd.f32 0.0, %v2234
        %v2236 = vpop.f32.mrb[0].mxu0
        %2237 = vmatprep.mubr.bf16.mxu0 0
        %2238 = vmatmul.mubr.bf16.gmra.mrb[0].mxu0 %v2169
        %v2239 = vpop.f32.mrb[0].mxu0
        %v2240 = vadd.f32 0.0, %v2239
        %v2241 = vpop.f32.mrb[0].mxu0
        %v2242 = vpop.f32.mrb[0].mxu0
        %v2243 = vadd.f32 0.0, %v2242
        %v2244 = vpop.f32.mrb[0].mxu0
        %2245 = vmatprep.mubr.bf16.mxu0 0
        %2246 = vmatmul.mubr.bf16.gmra.mrb[0].mxu0 %v2172
        %v2247 = vpop.f32.mrb[0].mxu0
        %v2248 = vadd.f32 0.0, %v2247
        %v2249 = vpop.f32.mrb[0].mxu0
        %v2250 = vpop.f32.mrb[0].mxu0
        %v2251 = vadd.f32 0.0, %v2250
        %v2252 = vpop.f32.mrb[0].mxu0
        %2253 = vmatprep.mubr.bf16.mxu0 0
        %2254 = vmatmul.mubr.bf16.gmra.mrb[0].mxu0 %v2175
        %v2255 = vpop.f32.mrb[0].mxu0
        %v2256 = vadd.f32 0.0, %v2255
        %v2257 = vpop.f32.mrb[0].mxu0
        %v2258 = vpop.f32.mrb[0].mxu0
        %v2259 = vadd.f32 0.0, %v2258
        %v2260 = vpop.f32.mrb[0].mxu0
        %2261 = vmatprep.mubr.bf16.mxu0 0
        %2262 = vmatmul.mubr.bf16.gmra.mrb[0].mxu0 %v2178
        %v2263 = vpop.f32.mrb[0].mxu0
        %v2264 = vadd.f32 0.0, %v2263
        %v2265 = vpop.f32.mrb[0].mxu0
        %v2266 = vpop.f32.mrb[0].mxu0
        %v2267 = vadd.f32 0.0, %v2266
        %v2268 = vpop.f32.mrb[0].mxu0
        %2269 = vmatprep.mubr.bf16.mxu0 0
        %2270 = vmatmul.mubr.bf16.gmra.mrb[0].mxu0 %v2181
        %v2271 = vpop.f32.mrb[0].mxu0
        %v2272 = vadd.f32 0.0, %v2271
        %v2273 = vpop.f32.mrb[0].mxu0
        %v2274 = vpop.f32.mrb[0].mxu0
        %v2275 = vadd.f32 0.0, %v2274
        %v2276 = vpop.f32.mrb[0].mxu0
        %2277 = vmatprep.mubr.bf16.mxu0 0
        %2278 = vmatmul.mubr.bf16.gmra.mrb[0].mxu0 %v2184
        %v2279 = vpop.f32.mrb[0].mxu0
        %v2280 = vadd.f32 0.0, %v2279
        %v2281 = vpop.f32.mrb[0].mxu0
        %v2282 = vpop.f32.mrb[0].mxu0
        %v2283 = vadd.f32 0.0, %v2282
        %v2284 = vpop.f32.mrb[0].mxu0
        %2285 = vdwg.mxu0
        %2302 = vrot.lane.b32.xlu0 %v2224, 8
        %v2303 = vpop.permute.xlu0 %2302
        %2304 = vrot.lane.b32.xlu0 %v2227, 8
        %v2305 = vpop.permute.xlu0 %2304
        %2306 = vrot.lane.b32.xlu0 %v2232, 8
        %v2307 = vpop.permute.xlu0 %2306
        %2308 = vrot.lane.b32.xlu0 %v2235, 8
        %v2309 = vpop.permute.xlu0 %2308
        %2310 = vrot.lane.b32.xlu0 %v2240, 8
        %v2311 = vpop.permute.xlu0 %2310
        %2312 = vrot.lane.b32.xlu0 %v2243, 8
        %v2313 = vpop.permute.xlu0 %2312
        %2314 = vrot.lane.b32.xlu0 %v2248, 8
        %v2315 = vpop.permute.xlu0 %2314
        %2316 = vrot.lane.b32.xlu0 %v2251, 8
        %v2317 = vpop.permute.xlu0 %2316
        %2318 = vrot.lane.b32.xlu0 %v2256, 8
        %v2319 = vpop.permute.xlu0 %2318
        %2320 = vrot.lane.b32.xlu0 %v2259, 8
        %v2321 = vpop.permute.xlu0 %2320
        %2322 = vrot.lane.b32.xlu0 %v2264, 8
        %v2323 = vpop.permute.xlu0 %2322
        %2324 = vrot.lane.b32.xlu0 %v2267, 8
        %v2325 = vpop.permute.xlu0 %2324
        %2326 = vrot.lane.b32.xlu0 %v2272, 8
        %v2327 = vpop.permute.xlu0 %2326
        %2328 = vrot.lane.b32.xlu0 %v2275, 8
        %v2329 = vpop.permute.xlu0 %2328
        %2330 = vrot.lane.b32.xlu0 %v2280, 8
        %v2331 = vpop.permute.xlu0 %2330
        %2332 = vrot.lane.b32.xlu0 %v2283, 8
        %v2333 = vpop.permute.xlu0 %2332
        %v2350 = vsel %vm1086, %v1368, %v2303
        %v2351 = vsel %vm1086, %v1371, %v2305
        %v2352 = vsel %vm1086, %v1376, %v2307
        %v2353 = vsel %vm1086, %v1379, %v2309
        %v2354 = vsel %vm1086, %v1384, %v2311
        %v2355 = vsel %vm1086, %v1387, %v2313
        %v2356 = vsel %vm1086, %v1392, %v2315
        %v2357 = vsel %vm1086, %v1395, %v2317
        %v2358 = vsel %vm1086, %v1400, %v2319
        %v2359 = vsel %vm1086, %v1403, %v2321
        %v2360 = vsel %vm1086, %v1408, %v2323
        %v2361 = vsel %vm1086, %v1411, %v2325
        %v2362 = vsel %vm1086, %v1416, %v2327
        %v2363 = vsel %vm1086, %v1419, %v2329
        %v2364 = vsel %vm1086, %v1424, %v2331
        %v2365 = vsel %vm1086, %v1427, %v2333
        %v2366 = vld [vmem:[%s9] sm:$0x1]
        %v2368 = vlaneseq
        %v2369 = vshrl.u32 %v2368, 7
        %v2370 = vsub.s32 0, %v2369
        %v2371 = vrot.slane %v2366, %v2370
        %v2373 = vadd.f32 %v2350, %v2371
        %v2374 = vadd.f32 %v2351, %v2371
        %v2375 = vadd.f32 %v2352, %v2371
        %v2376 = vadd.f32 %v2353, %v2371
        %v2377 = vadd.f32 %v2354, %v2371
        %v2378 = vadd.f32 %v2355, %v2371
        %v2379 = vadd.f32 %v2356, %v2371
        %v2380 = vadd.f32 %v2357, %v2371
        %v2381 = vadd.f32 %v2358, %v2371
        %v2382 = vadd.f32 %v2359, %v2371
        %v2383 = vadd.f32 %v2360, %v2371
        %v2384 = vadd.f32 %v2361, %v2371
        %v2385 = vadd.f32 %v2362, %v2371
        %v2386 = vadd.f32 %v2363, %v2371
        %v2387 = vadd.f32 %v2364, %v2371
        %v2388 = vadd.f32 %v2365, %v2371
        %2389 = vxpose.xlu0.b32.start [1/16] %v2373, 128
        %2390 = vxpose.xlu0.b32.cont [2/16] %v2374, 128
        %2391 = vxpose.xlu0.b32.cont [3/16] %v2375, 128
        %2392 = vxpose.xlu0.b32.cont [4/16] %v2376, 128
        %2393 = vxpose.xlu0.b32.cont [5/16] %v2377, 128
        %2394 = vxpose.xlu0.b32.cont [6/16] %v2378, 128
        %2395 = vxpose.xlu0.b32.cont [7/16] %v2379, 128
        %2396 = vxpose.xlu0.b32.cont [8/16] %v2380, 128
        %2397 = vxpose.xlu0.b32.cont [9/16] %v2381, 128
        %2398 = vxpose.xlu0.b32.cont [10/16] %v2382, 128
        %2399 = vxpose.xlu0.b32.cont [11/16] %v2383, 128
        %2400 = vxpose.xlu0.b32.cont [12/16] %v2384, 128
        %2401 = vxpose.xlu0.b32.cont [13/16] %v2385, 128
        %2402 = vxpose.xlu0.b32.cont [14/16] %v2386, 128
        %2403 = vxpose.xlu0.b32.cont [15/16] %v2387, 128
        %2404 = vxpose.xlu0.b32.end [16/16] %v2388, 128
        %v2405 = vpop.trf.xlu0
        %v2406 = vpop.trf.xlu0
        %v2407 = vpop.trf.xlu0
        %v2408 = vpop.trf.xlu0
        %v2409 = vpop.trf.xlu0
        %v2410 = vpop.trf.xlu0
        %v2411 = vpop.trf.xlu0
        %v2412 = vpop.trf.xlu0
        %v2413 = vpop.trf.xlu0
        %v2414 = vpop.trf.xlu0
        %v2415 = vpop.trf.xlu0
        %v2416 = vpop.trf.xlu0
        %v2417 = vpop.trf.xlu0
        %v2418 = vpop.trf.xlu0
        %v2419 = vpop.trf.xlu0
        %v2420 = vpop.trf.xlu0
        %2421 = vst [vmem:[%s352] sm:$0xff] %v2405
        %2422 = vst [vmem:[%s352 + $0x8] sm:$0xff] %v2406
        %s2423 = sand.u32 %s247, 1
        %s2424 = scalar_lea.sflag [#allocation3], %s2423
        %s2425 = sand.u32 %s247, 1
        %s2426 = smul.addr %s2425, 16
        %s2427 = scalar_lea.vmem [#allocation2], %s2426
        // Predicated region
        $region61: #{tpu_custom_call.1} parent=59 // pred_check
          %p2428 = pneg %p257
        $region62: #{tpu_custom_call.1} parent=59 // pred_check_branch
          %2430 = sbr.rel (%p2428) target = $region64
        $region63: #{tpu_custom_call.1} parent=59 // pred_region
          %s2432 = ssub.s32 256, 256
          %2433 = vsyncadd %s2424, %s2432
          %s2434 = smul.addr %s24, 2
          %s2435 = smul.addr %s2434, 128
          %s2436 = scalar_lea.hbm %s10, %s2435
          %s2437 = sshll.u32 %s2427, 4
          %s2438 = int_to_ptr.vmem [resolvable:$true] %s2437
          %2443 = dma.vmem_to_hbm [thread:$0]  %s2438, 256, %s2436, %s2424, 128, 128, 8
        $region64: #{tpu_custom_call.1} parent=59 // pred_fallthru
          _
      $region60: #{tpu_custom_call.1} parent=5 // pred_fallthru
        _
      %p2444 = scmp.le.s32.totalorder 2, %s19
      // Predicated region
      $region65: #{tpu_custom_call.1} parent=5 // pred_check
        %p2445 = pneg %p2444
      $region66: #{tpu_custom_call.1} parent=5 // pred_check_branch
        %2447 = sbr.rel (%p2445) target = $region68
      $region67: #{tpu_custom_call.1} parent=5 // pred_region
        %s2448 = ssub.s32 %s19, 2
        // Predicated region
        $region69: #{tpu_custom_call.1} parent=67 // pred_check
          %p2449 = pneg %p263
        $region70: #{tpu_custom_call.1} parent=67 // pred_check_branch
          %2451 = sbr.rel (%p2449) target = $region72
        $region71: #{tpu_custom_call.1} parent=67 // pred_region
          %s2452 = sand.u32 %s248, 1
          %s2453 = scalar_lea.sflag [#allocation3], %s2452
          %s2454 = sand.u32 %s248, 1
          %s2455 = smul.addr %s2454, 16
          %s2456 = scalar_lea.vmem [#allocation2], %s2455
          %2457 = dma.done %s2453, 256
        $region72: #{tpu_custom_call.1} parent=67 // pred_fallthru
          _
      $region68: #{tpu_custom_call.1} parent=5 // pred_fallthru
        _
    $region6: #{tpu_custom_call.1} parent=1 // loop_footer
      %s23 = sadd.s32 1, %s19
    $region7: #{tpu_custom_call.1} parent=1 // loop_footer_branch
      %18 = sbr.rel target = $region3
    $region8: #{tpu_custom_call.1} parent=1 // loop_exit
      _
    %2458 = vsyncpa [#allocation3], 1
    %s2459 = scalar_lea.sflag [#allocation3], 1
    %2460 = vsyncpa %s2459, 1

</llo_original>
